<compile_context>
chip_gen: v7x
topology: tpu7x:2x2x1
jax: 0.10.0
libtpu: 0.0.40
codegen_flags: <defaults>
</compile_context>

<pallas_src>
import functools
import math

import jax
import jax.numpy as jnp
from jax.experimental import pallas as pl
from jax.experimental.pallas import tpu as pltpu


# ---------------------------------------------------------------------------
# Fused kernel: all LSTM layers + both linear heads, single invocation.
# ---------------------------------------------------------------------------
def _fused_lstm_heads_kernel(T, B, H, num_layers, x_ref, *refs):
    """Ref layout (after the statically bound T/B/H/num_layers):

      x_ref                  : (B*T, F)   batch-major rows, row index = b*T + t
      per layer l            : wih_l (F_in, 4H), whh_l (H, 4H), b_l (1, 4H)
      whead                  : (H, P)     merged [eou | vad | zero padding]
      bhead                  : (1, P)
      out_ref                : (B*T, P)
      gx_scr                 : (B*T, 4H)  VMEM scratch (hoisted input proj.)
      seq_scr                : (B*T, H)   VMEM scratch (per-step hidden states)
    """
    n_w = 3 * num_layers
    layer_refs = refs[:n_w]
    whead_ref, bhead_ref = refs[n_w], refs[n_w + 1]
    out_ref = refs[n_w + 2]
    gx_scr, seq_scr = refs[n_w + 3], refs[n_w + 4]

    cur = x_ref[...]                                       # (B*T, F_in)
    for layer in range(num_layers):
        wih_ref = layer_refs[3 * layer + 0]
        whh_ref = layer_refs[3 * layer + 1]
        b_ref = layer_refs[3 * layer + 2]

        # Hoisted input projection + bias: ONE matmul for all timesteps,
        # off the sequential critical path.
        gx_scr[...] = (
            jnp.dot(cur, wih_ref[...], preferred_element_type=jnp.float32)
            + b_ref[...])

        whh = whh_ref[...]                                 # (H, 4H), resident
        h = jnp.zeros((B, H), jnp.float32)
        c = jnp.zeros((B, H), jnp.float32)

        # Fully unrolled time recurrence (T is static and small): equivalent
        # to lax.fori_loop(..., unroll=True), but every index below is a
        # compile-time constant so all slices/loads are static.
        for t in range(T):
            # Rows {b*T + t for b in range(B)}: static strided sublane load.
            gates = gx_scr[pl.ds(t, B, stride=T)] + jnp.dot(
                h, whh, preferred_element_type=jnp.float32)   # (B, 4H)

            # Two full-width transcendentals per step (EUP-friendly); gate
            # blocks are then static lane slices (PyTorch order i, f, g, o).
            sg = jax.nn.sigmoid(gates)
            th = jnp.tanh(gates)
            i_g = sg[:, 0 * H:1 * H]
            f_g = sg[:, 1 * H:2 * H]
            g_g = th[:, 2 * H:3 * H]
            o_g = sg[:, 3 * H:4 * H]

            c = f_g * c + i_g * g_g
            h = o_g * jnp.tanh(c)

            # Scatter this step's hidden rows into the batch-major slab.
            for b in range(B):
                seq_scr[pl.ds(b * T + t, 1), :] = h[b:b + 1, :]

        cur = seq_scr[...]                                 # (B*T, H)

    # Merged eou/vad heads: one matmul, one lane-dense (B*T, P) store.
    out_ref[...] = (
        jnp.dot(cur, whead_ref[...], preferred_element_type=jnp.float32)
        + bhead_ref[...])


# ---------------------------------------------------------------------------
# Full forward pass: one pallas_call; only free reshapes / slices outside.
# ---------------------------------------------------------------------------
def eou_vad_lstm_forward(params, x):
    """x: (B, T, eou_window_size * n_mels) batch_first, float32."""
    # TODO(synk): optional (h0, c0) initial-state passthrough not wired; zero
    # init is used, matching nn.LSTM's default. Dropout is identity (p=0.0 /
    # eval semantics); self.relu is declared but unused by the PyTorch forward.
    B, T, F = x.shape
    lstm = params["lstm"]
    num_layers = len(lstm)
    H = lstm[0][1].shape[1]                       # w_hh: (4H, H)
    we, be = params["linear_eou"]
    wv, bv = params["linear_vad"]
    C = we.shape[0]
    P = ((2 * C + 127) // 128) * 128              # lane-dense padded head width

    # Pack weights for the kernel: pre-transpose to (in, 4H), fold the two
    # LSTM biases, merge + zero-pad both heads into one (H, P) matrix.
    inputs = [x.reshape(B * T, F)]                # free reshape (rows = b*T+t)
    for (w_ih, w_hh, b_ih, b_hh) in lstm:
        inputs += [w_ih.T, w_hh.T, (b_ih + b_hh)[None, :]]
    w_head = (jnp.zeros((H, P), jnp.float32)
              .at[:, :C].set(we.T).at[:, C:2 * C].set(wv.T))
    b_head = (jnp.zeros((1, P), jnp.float32)
              .at[:, :C].set(be[None, :]).at[:, C:2 * C].set(bv[None, :]))
    inputs += [w_head, b_head]

    vmem = pl.BlockSpec(memory_space=pltpu.MemorySpace.VMEM)
    out = pl.pallas_call(
        functools.partial(_fused_lstm_heads_kernel, T, B, H, num_layers),
        out_shape=jax.ShapeDtypeStruct((B * T, P), jnp.float32),
        in_specs=[vmem] * len(inputs),
        out_specs=vmem,
        scratch_shapes=[
            pltpu.VMEM((B * T, 4 * H), jnp.float32),   # gx_scr
            pltpu.VMEM((B * T, H), jnp.float32),       # seq_scr
        ],
    )(*inputs)

    out = out.reshape(B, T, P)                    # free reshape (batch-major)
    return out[..., :C], out[..., C:2 * C]


# ---------------------------------------------------------------------------
# Parameter construction (deterministic; mimics PyTorch uniform init).
# ---------------------------------------------------------------------------
def init_params(key, input_size, hidden_size, num_layers, classes_no):
    bound = 1.0 / math.sqrt(hidden_size)
    params = {"lstm": []}
    for layer in range(num_layers):
        f_in = input_size if layer == 0 else hidden_size
        key, k1, k2, k3, k4 = jax.random.split(key, 5)
        w_ih = jax.random.uniform(k1, (4 * hidden_size, f_in),
                                  jnp.float32, -bound, bound)
        w_hh = jax.random.uniform(k2, (4 * hidden_size, hidden_size),
                                  jnp.float32, -bound, bound)
        b_ih = jax.random.uniform(k3, (4 * hidden_size,),
                                  jnp.float32, -bound, bound)
        b_hh = jax.random.uniform(k4, (4 * hidden_size,),
                                  jnp.float32, -bound, bound)
        params["lstm"].append((w_ih, w_hh, b_ih, b_hh))
    key, k1, k2, k3, k4 = jax.random.split(key, 5)
    lb = 1.0 / math.sqrt(hidden_size)
    params["linear_eou"] = (
        jax.random.uniform(k1, (classes_no, hidden_size), jnp.float32, -lb, lb),
        jax.random.uniform(k2, (classes_no,), jnp.float32, -lb, lb),
    )
    params["linear_vad"] = (
        jax.random.uniform(k3, (classes_no, hidden_size), jnp.float32, -lb, lb),
        jax.random.uniform(k4, (classes_no,), jnp.float32, -lb, lb),
    )
    return params


# ---------------------------------------------------------------------------
# Pure-JAX reference (HIGHEST-precision matmuls = numerical ground truth).
# ---------------------------------------------------------------------------
def reference_forward(params, x):
    hi = jax.lax.Precision.HIGHEST
    B, T, _ = x.shape
    seq = x
    for (w_ih, w_hh, b_ih, b_hh) in params["lstm"]:
        H = w_hh.shape[1]
        h = jnp.zeros((B, H), jnp.float32)
        c = jnp.zeros((B, H), jnp.float32)
        outs = []
        for t in range(T):
            gates = (jnp.dot(seq[:, t, :], w_ih.T, precision=hi) + b_ih
                     + jnp.dot(h, w_hh.T, precision=hi) + b_hh)
            i = jax.nn.sigmoid(gates[:, 0 * H:1 * H])
            f = jax.nn.sigmoid(gates[:, 1 * H:2 * H])
            g = jnp.tanh(gates[:, 2 * H:3 * H])
            o = jax.nn.sigmoid(gates[:, 3 * H:4 * H])
            c = f * c + i * g
            h = o * jnp.tanh(c)
            outs.append(h)
        seq = jnp.stack(outs, axis=1)                     # (B, T, H)
    we, be = params["linear_eou"]
    wv, bv = params["linear_vad"]
    eou = jnp.dot(seq, we.T, precision=hi) + be
    vad = jnp.dot(seq, wv.T, precision=hi) + bv
    return eou, vad


if __name__ == "__main__":
    # Module hyperparameters (small, consistent with the forward pass).
    eou_window_size = 4
    n_mels = 8
    hidden_size = 32
    num_layers = 2
    batch_size = 2
    seq_len = 8
    classes_no = 1
    input_size = eou_window_size * n_mels  # 32

    key = jax.random.PRNGKey(0)
    kp, kx = jax.random.split(key)
    params = init_params(kp, input_size, hidden_size, num_layers, classes_no)
    x = jax.random.normal(kx, (batch_size, seq_len, input_size), jnp.float32)

    eou, vad = jax.jit(eou_vad_lstm_forward)(params, x)
    jax.block_until_ready((eou, vad))

    eou_ref, vad_ref = reference_forward(params, x)
    assert eou.shape == (batch_size, seq_len, classes_no)
    assert vad.shape == (batch_size, seq_len, classes_no)
    # Kernel matmuls run at DEFAULT MXU precision (per perf review); compare
    # against the HIGHEST-precision reference with a correspondingly relaxed
    # tolerance (review: "may need atol ~ 1e-3").
    assert jnp.allclose(eou, eou_ref, atol=2e-3, rtol=2e-3), (
        "eou max abs err", float(jnp.max(jnp.abs(eou - eou_ref))))
    assert jnp.allclose(vad, vad_ref, atol=2e-3, rtol=2e-3), (
        "vad max abs err", float(jnp.max(jnp.abs(vad - vad_ref))))

    print("KERNEL_OK")
</pallas_src>

<mosaic_0001>
module attributes {stable_mosaic.version = 11 : i64} {
  func.func @_fused_lstm_heads_kernel(%arg0: memref<16x32xf32, #tpu.memory_space<vmem>>, %arg1: memref<32x128xf32, #tpu.memory_space<vmem>>, %arg2: memref<32x128xf32, #tpu.memory_space<vmem>>, %arg3: memref<1x128xf32, #tpu.memory_space<vmem>>, %arg4: memref<32x128xf32, #tpu.memory_space<vmem>>, %arg5: memref<32x128xf32, #tpu.memory_space<vmem>>, %arg6: memref<1x128xf32, #tpu.memory_space<vmem>>, %arg7: memref<32x128xf32, #tpu.memory_space<vmem>>, %arg8: memref<1x128xf32, #tpu.memory_space<vmem>>, %arg9: memref<16x128xf32, #tpu.memory_space<vmem>>, %arg10: memref<16x128xf32, #tpu.memory_space<vmem>>, %arg11: memref<16x32xf32, #tpu.memory_space<vmem>>) attributes {dimension_semantics = [], scalar_prefetch = 0 : i64, scratch_operands = 2 : i64, tpu.core_type = #tpu.core_type<tc>} {
    %c0 = arith.constant 0 : index
    %c0_0 = arith.constant 0 : index
    %0 = vector.load %arg0[%c0, %c0_0] : memref<16x32xf32, #tpu.memory_space<vmem>>, vector<16x32xf32>
    %c0_1 = arith.constant 0 : index
    %c0_2 = arith.constant 0 : index
    %1 = vector.load %arg1[%c0_1, %c0_2] : memref<32x128xf32, #tpu.memory_space<vmem>>, vector<32x128xf32>
    %cst = arith.constant dense<0.000000e+00> : vector<16x128xf32>
    %2 = tpu.matmul %0, %1, %cst {dimension_numbers = #tpu.dot_dimension_numbers<[1], [0], [0], [1], [0, 0, 1, 1], [], []>} : vector<16x32xf32>, vector<32x128xf32>, vector<16x128xf32> -> vector<16x128xf32>
    %c0_3 = arith.constant 0 : index
    %c0_4 = arith.constant 0 : index
    %3 = vector.load %arg3[%c0_3, %c0_4] : memref<1x128xf32, #tpu.memory_space<vmem>>, vector<1x128xf32>
    %4 = vector.broadcast %3 : vector<1x128xf32> to vector<16x128xf32>
    %5 = arith.addf %2, %4 : vector<16x128xf32>
    %c0_5 = arith.constant 0 : index
    %c0_6 = arith.constant 0 : index
    %6 = vector.load %arg10[%c0_5, %c0_6] : memref<16x128xf32, #tpu.memory_space<vmem>>, vector<16x128xf32>
    tpu.vector_store %arg10[%c0_5, %c0_6], %5 {strides = array<i32>} : memref<16x128xf32, #tpu.memory_space<vmem>>, vector<16x128xf32>,
    %c0_7 = arith.constant 0 : index
    %c0_8 = arith.constant 0 : index
    %7 = vector.load %arg2[%c0_7, %c0_8] : memref<32x128xf32, #tpu.memory_space<vmem>>, vector<32x128xf32>
    %cst_9 = arith.constant 0.000000e+00 : f32
    %8 = vector.broadcast %cst_9 : f32 to vector<2x32xf32>
    %cst_10 = arith.constant 0.000000e+00 : f32
    %9 = vector.broadcast %cst_10 : f32 to vector<2x32xf32>
    %c0_11 = arith.constant 0 : index
    %c0_12 = arith.constant 0 : index
    %10 = tpu.strided_load %arg10[%c0_11, %c0_12] {strides = array<i32: 8, 1>} : memref<16x128xf32, #tpu.memory_space<vmem>>, vector<2x128xf32>
    %cst_13 = arith.constant dense<0.000000e+00> : vector<2x128xf32>
    %11 = tpu.matmul %8, %7, %cst_13 {dimension_numbers = #tpu.dot_dimension_numbers<[1], [0], [0], [1], [0, 0, 1, 1], [], []>} : vector<2x32xf32>, vector<32x128xf32>, vector<2x128xf32> -> vector<2x128xf32>
    %12 = arith.addf %10, %11 : vector<2x128xf32>
    %13 = arith.negf %12 : vector<2x128xf32>
    %14 = math.exp %13 : vector<2x128xf32>
    %cst_14 = arith.constant 1.000000e+00 : f32
    %15 = vector.broadcast %cst_14 : f32 to vector<2x128xf32>
    %16 = arith.addf %15, %14 : vector<2x128xf32>
    %17 = arith.divf %15, %16 : vector<2x128xf32>
    %18 = math.tanh %12 : vector<2x128xf32>
    %19 = vector.extract_strided_slice %17 {offsets = [0, 0], sizes = [2, 32], strides = [1, 1]} : vector<2x128xf32> to vector<2x32xf32>
    %20 = vector.extract_strided_slice %17 {offsets = [0, 32], sizes = [2, 32], strides = [1, 1]} : vector<2x128xf32> to vector<2x32xf32>
    %21 = vector.extract_strided_slice %18 {offsets = [0, 64], sizes = [2, 32], strides = [1, 1]} : vector<2x128xf32> to vector<2x32xf32>
    %22 = vector.extract_strided_slice %17 {offsets = [0, 96], sizes = [2, 32], strides = [1, 1]} : vector<2x128xf32> to vector<2x32xf32>
    %23 = arith.mulf %20, %9 : vector<2x32xf32>
    %24 = arith.mulf %19, %21 : vector<2x32xf32>
    %25 = arith.addf %23, %24 : vector<2x32xf32>
    %26 = math.tanh %25 : vector<2x32xf32>
    %27 = arith.mulf %22, %26 : vector<2x32xf32>
    %28 = vector.extract_strided_slice %27 {offsets = [0, 0], sizes = [1, 32], strides = [1, 1]} : vector<2x32xf32> to vector<1x32xf32>
    %c0_15 = arith.constant 0 : index
    %c0_16 = arith.constant 0 : index
    %29 = vector.load %arg11[%c0_15, %c0_16] : memref<16x32xf32, #tpu.memory_space<vmem>>, vector<1x32xf32>
    tpu.vector_store %arg11[%c0_15, %c0_16], %28 {strides = array<i32>} : memref<16x32xf32, #tpu.memory_space<vmem>>, vector<1x32xf32>,
    %30 = vector.extract_strided_slice %27 {offsets = [1, 0], sizes = [1, 32], strides = [1, 1]} : vector<2x32xf32> to vector<1x32xf32>
    %c8 = arith.constant 8 : index
    %c0_17 = arith.constant 0 : index
    %31 = vector.load %arg11[%c8, %c0_17] : memref<16x32xf32, #tpu.memory_space<vmem>>, vector<1x32xf32>
    tpu.vector_store %arg11[%c8, %c0_17], %30 {strides = array<i32>} : memref<16x32xf32, #tpu.memory_space<vmem>>, vector<1x32xf32>,
    %c1 = arith.constant 1 : index
    %c0_18 = arith.constant 0 : index
    %32 = tpu.strided_load %arg10[%c1, %c0_18] {strides = array<i32: 8, 1>} : memref<16x128xf32, #tpu.memory_space<vmem>>, vector<2x128xf32>
    %cst_19 = arith.constant dense<0.000000e+00> : vector<2x128xf32>
    %33 = tpu.matmul %27, %7, %cst_19 {dimension_numbers = #tpu.dot_dimension_numbers<[1], [0], [0], [1], [0, 0, 1, 1], [], []>} : vector<2x32xf32>, vector<32x128xf32>, vector<2x128xf32> -> vector<2x128xf32>
    %34 = arith.addf %32, %33 : vector<2x128xf32>
    %35 = arith.negf %34 : vector<2x128xf32>
    %36 = math.exp %35 : vector<2x128xf32>
    %cst_20 = arith.constant 1.000000e+00 : f32
    %37 = vector.broadcast %cst_20 : f32 to vector<2x128xf32>
    %38 = arith.addf %37, %36 : vector<2x128xf32>
    %39 = arith.divf %37, %38 : vector<2x128xf32>
    %40 = math.tanh %34 : vector<2x128xf32>
    %41 = vector.extract_strided_slice %39 {offsets = [0, 0], sizes = [2, 32], strides = [1, 1]} : vector<2x128xf32> to vector<2x32xf32>
    %42 = vector.extract_strided_slice %39 {offsets = [0, 32], sizes = [2, 32], strides = [1, 1]} : vector<2x128xf32> to vector<2x32xf32>
    %43 = vector.extract_strided_slice %40 {offsets = [0, 64], sizes = [2, 32], strides = [1, 1]} : vector<2x128xf32> to vector<2x32xf32>
    %44 = vector.extract_strided_slice %39 {offsets = [0, 96], sizes = [2, 32], strides = [1, 1]} : vector<2x128xf32> to vector<2x32xf32>
    %45 = arith.mulf %42, %25 : vector<2x32xf32>
    %46 = arith.mulf %41, %43 : vector<2x32xf32>
    %47 = arith.addf %45, %46 : vector<2x32xf32>
    %48 = math.tanh %47 : vector<2x32xf32>
    %49 = arith.mulf %44, %48 : vector<2x32xf32>
    %50 = vector.extract_strided_slice %49 {offsets = [0, 0], sizes = [1, 32], strides = [1, 1]} : vector<2x32xf32> to vector<1x32xf32>
    %c1_21 = arith.constant 1 : index
    %c0_22 = arith.constant 0 : index
    %51 = vector.load %arg11[%c1_21, %c0_22] : memref<16x32xf32, #tpu.memory_space<vmem>>, vector<1x32xf32>
    tpu.vector_store %arg11[%c1_21, %c0_22], %50 {strides = array<i32>} : memref<16x32xf32, #tpu.memory_space<vmem>>, vector<1x32xf32>,
    %52 = vector.extract_strided_slice %49 {offsets = [1, 0], sizes = [1, 32], strides = [1, 1]} : vector<2x32xf32> to vector<1x32xf32>
    %c9 = arith.constant 9 : index
    %c0_23 = arith.constant 0 : index
    %53 = vector.load %arg11[%c9, %c0_23] : memref<16x32xf32, #tpu.memory_space<vmem>>, vector<1x32xf32>
    tpu.vector_store %arg11[%c9, %c0_23], %52 {strides = array<i32>} : memref<16x32xf32, #tpu.memory_space<vmem>>, vector<1x32xf32>,
    %c2 = arith.constant 2 : index
    %c0_24 = arith.constant 0 : index
    %54 = tpu.strided_load %arg10[%c2, %c0_24] {strides = array<i32: 8, 1>} : memref<16x128xf32, #tpu.memory_space<vmem>>, vector<2x128xf32>
    %cst_25 = arith.constant dense<0.000000e+00> : vector<2x128xf32>
    %55 = tpu.matmul %49, %7, %cst_25 {dimension_numbers = #tpu.dot_dimension_numbers<[1], [0], [0], [1], [0, 0, 1, 1], [], []>} : vector<2x32xf32>, vector<32x128xf32>, vector<2x128xf32> -> vector<2x128xf32>
    %56 = arith.addf %54, %55 : vector<2x128xf32>
    %57 = arith.negf %56 : vector<2x128xf32>
    %58 = math.exp %57 : vector<2x128xf32>
    %cst_26 = arith.constant 1.000000e+00 : f32
    %59 = vector.broadcast %cst_26 : f32 to vector<2x128xf32>
    %60 = arith.addf %59, %58 : vector<2x128xf32>
    %61 = arith.divf %59, %60 : vector<2x128xf32>
    %62 = math.tanh %56 : vector<2x128xf32>
    %63 = vector.extract_strided_slice %61 {offsets = [0, 0], sizes = [2, 32], strides = [1, 1]} : vector<2x128xf32> to vector<2x32xf32>
    %64 = vector.extract_strided_slice %61 {offsets = [0, 32], sizes = [2, 32], strides = [1, 1]} : vector<2x128xf32> to vector<2x32xf32>
    %65 = vector.extract_strided_slice %62 {offsets = [0, 64], sizes = [2, 32], strides = [1, 1]} : vector<2x128xf32> to vector<2x32xf32>
    %66 = vector.extract_strided_slice %61 {offsets = [0, 96], sizes = [2, 32], strides = [1, 1]} : vector<2x128xf32> to vector<2x32xf32>
    %67 = arith.mulf %64, %47 : vector<2x32xf32>
    %68 = arith.mulf %63, %65 : vector<2x32xf32>
    %69 = arith.addf %67, %68 : vector<2x32xf32>
    %70 = math.tanh %69 : vector<2x32xf32>
    %71 = arith.mulf %66, %70 : vector<2x32xf32>
    %72 = vector.extract_strided_slice %71 {offsets = [0, 0], sizes = [1, 32], strides = [1, 1]} : vector<2x32xf32> to vector<1x32xf32>
    %c2_27 = arith.constant 2 : index
    %c0_28 = arith.constant 0 : index
    %73 = vector.load %arg11[%c2_27, %c0_28] : memref<16x32xf32, #tpu.memory_space<vmem>>, vector<1x32xf32>
    tpu.vector_store %arg11[%c2_27, %c0_28], %72 {strides = array<i32>} : memref<16x32xf32, #tpu.memory_space<vmem>>, vector<1x32xf32>,
    %74 = vector.extract_strided_slice %71 {offsets = [1, 0], sizes = [1, 32], strides = [1, 1]} : vector<2x32xf32> to vector<1x32xf32>
    %c10 = arith.constant 10 : index
    %c0_29 = arith.constant 0 : index
    %75 = vector.load %arg11[%c10, %c0_29] : memref<16x32xf32, #tpu.memory_space<vmem>>, vector<1x32xf32>
    tpu.vector_store %arg11[%c10, %c0_29], %74 {strides = array<i32>} : memref<16x32xf32, #tpu.memory_space<vmem>>, vector<1x32xf32>,
    %c3 = arith.constant 3 : index
    %c0_30 = arith.constant 0 : index
    %76 = tpu.strided_load %arg10[%c3, %c0_30] {strides = array<i32: 8, 1>} : memref<16x128xf32, #tpu.memory_space<vmem>>, vector<2x128xf32>
    %cst_31 = arith.constant dense<0.000000e+00> : vector<2x128xf32>
    %77 = tpu.matmul %71, %7, %cst_31 {dimension_numbers = #tpu.dot_dimension_numbers<[1], [0], [0], [1], [0, 0, 1, 1], [], []>} : vector<2x32xf32>, vector<32x128xf32>, vector<2x128xf32> -> vector<2x128xf32>
    %78 = arith.addf %76, %77 : vector<2x128xf32>
    %79 = arith.negf %78 : vector<2x128xf32>
    %80 = math.exp %79 : vector<2x128xf32>
    %cst_32 = arith.constant 1.000000e+00 : f32
    %81 = vector.broadcast %cst_32 : f32 to vector<2x128xf32>
    %82 = arith.addf %81, %80 : vector<2x128xf32>
    %83 = arith.divf %81, %82 : vector<2x128xf32>
    %84 = math.tanh %78 : vector<2x128xf32>
    %85 = vector.extract_strided_slice %83 {offsets = [0, 0], sizes = [2, 32], strides = [1, 1]} : vector<2x128xf32> to vector<2x32xf32>
    %86 = vector.extract_strided_slice %83 {offsets = [0, 32], sizes = [2, 32], strides = [1, 1]} : vector<2x128xf32> to vector<2x32xf32>
    %87 = vector.extract_strided_slice %84 {offsets = [0, 64], sizes = [2, 32], strides = [1, 1]} : vector<2x128xf32> to vector<2x32xf32>
    %88 = vector.extract_strided_slice %83 {offsets = [0, 96], sizes = [2, 32], strides = [1, 1]} : vector<2x128xf32> to vector<2x32xf32>
    %89 = arith.mulf %86, %69 : vector<2x32xf32>
    %90 = arith.mulf %85, %87 : vector<2x32xf32>
    %91 = arith.addf %89, %90 : vector<2x32xf32>
    %92 = math.tanh %91 : vector<2x32xf32>
    %93 = arith.mulf %88, %92 : vector<2x32xf32>
    %94 = vector.extract_strided_slice %93 {offsets = [0, 0], sizes = [1, 32], strides = [1, 1]} : vector<2x32xf32> to vector<1x32xf32>
    %c3_33 = arith.constant 3 : index
    %c0_34 = arith.constant 0 : index
    %95 = vector.load %arg11[%c3_33, %c0_34] : memref<16x32xf32, #tpu.memory_space<vmem>>, vector<1x32xf32>
    tpu.vector_store %arg11[%c3_33, %c0_34], %94 {strides = array<i32>} : memref<16x32xf32, #tpu.memory_space<vmem>>, vector<1x32xf32>,
    %96 = vector.extract_strided_slice %93 {offsets = [1, 0], sizes = [1, 32], strides = [1, 1]} : vector<2x32xf32> to vector<1x32xf32>
    %c11 = arith.constant 11 : index
    %c0_35 = arith.constant 0 : index
    %97 = vector.load %arg11[%c11, %c0_35] : memref<16x32xf32, #tpu.memory_space<vmem>>, vector<1x32xf32>
    tpu.vector_store %arg11[%c11, %c0_35], %96 {strides = array<i32>} : memref<16x32xf32, #tpu.memory_space<vmem>>, vector<1x32xf32>,
    %c4 = arith.constant 4 : index
    %c0_36 = arith.constant 0 : index
    %98 = tpu.strided_load %arg10[%c4, %c0_36] {strides = array<i32: 8, 1>} : memref<16x128xf32, #tpu.memory_space<vmem>>, vector<2x128xf32>
    %cst_37 = arith.constant dense<0.000000e+00> : vector<2x128xf32>
    %99 = tpu.matmul %93, %7, %cst_37 {dimension_numbers = #tpu.dot_dimension_numbers<[1], [0], [0], [1], [0, 0, 1, 1], [], []>} : vector<2x32xf32>, vector<32x128xf32>, vector<2x128xf32> -> vector<2x128xf32>
    %100 = arith.addf %98, %99 : vector<2x128xf32>
    %101 = arith.negf %100 : vector<2x128xf32>
    %102 = math.exp %101 : vector<2x128xf32>
    %cst_38 = arith.constant 1.000000e+00 : f32
    %103 = vector.broadcast %cst_38 : f32 to vector<2x128xf32>
    %104 = arith.addf %103, %102 : vector<2x128xf32>
    %105 = arith.divf %103, %104 : vector<2x128xf32>
    %106 = math.tanh %100 : vector<2x128xf32>
    %107 = vector.extract_strided_slice %105 {offsets = [0, 0], sizes = [2, 32], strides = [1, 1]} : vector<2x128xf32> to vector<2x32xf32>
    %108 = vector.extract_strided_slice %105 {offsets = [0, 32], sizes = [2, 32], strides = [1, 1]} : vector<2x128xf32> to vector<2x32xf32>
    %109 = vector.extract_strided_slice %106 {offsets = [0, 64], sizes = [2, 32], strides = [1, 1]} : vector<2x128xf32> to vector<2x32xf32>
    %110 = vector.extract_strided_slice %105 {offsets = [0, 96], sizes = [2, 32], strides = [1, 1]} : vector<2x128xf32> to vector<2x32xf32>
    %111 = arith.mulf %108, %91 : vector<2x32xf32>
    %112 = arith.mulf %107, %109 : vector<2x32xf32>
    %113 = arith.addf %111, %112 : vector<2x32xf32>
    %114 = math.tanh %113 : vector<2x32xf32>
    %115 = arith.mulf %110, %114 : vector<2x32xf32>
    %116 = vector.extract_strided_slice %115 {offsets = [0, 0], sizes = [1, 32], strides = [1, 1]} : vector<2x32xf32> to vector<1x32xf32>
    %c4_39 = arith.constant 4 : index
    %c0_40 = arith.constant 0 : index
    %117 = vector.load %arg11[%c4_39, %c0_40] : memref<16x32xf32, #tpu.memory_space<vmem>>, vector<1x32xf32>
    tpu.vector_store %arg11[%c4_39, %c0_40], %116 {strides = array<i32>} : memref<16x32xf32, #tpu.memory_space<vmem>>, vector<1x32xf32>,
    %118 = vector.extract_strided_slice %115 {offsets = [1, 0], sizes = [1, 32], strides = [1, 1]} : vector<2x32xf32> to vector<1x32xf32>
    %c12 = arith.constant 12 : index
    %c0_41 = arith.constant 0 : index
    %119 = vector.load %arg11[%c12, %c0_41] : memref<16x32xf32, #tpu.memory_space<vmem>>, vector<1x32xf32>
    tpu.vector_store %arg11[%c12, %c0_41], %118 {strides = array<i32>} : memref<16x32xf32, #tpu.memory_space<vmem>>, vector<1x32xf32>,
    %c5 = arith.constant 5 : index
    %c0_42 = arith.constant 0 : index
    %120 = tpu.strided_load %arg10[%c5, %c0_42] {strides = array<i32: 8, 1>} : memref<16x128xf32, #tpu.memory_space<vmem>>, vector<2x128xf32>
    %cst_43 = arith.constant dense<0.000000e+00> : vector<2x128xf32>
    %121 = tpu.matmul %115, %7, %cst_43 {dimension_numbers = #tpu.dot_dimension_numbers<[1], [0], [0], [1], [0, 0, 1, 1], [], []>} : vector<2x32xf32>, vector<32x128xf32>, vector<2x128xf32> -> vector<2x128xf32>
    %122 = arith.addf %120, %121 : vector<2x128xf32>
    %123 = arith.negf %122 : vector<2x128xf32>
    %124 = math.exp %123 : vector<2x128xf32>
    %cst_44 = arith.constant 1.000000e+00 : f32
    %125 = vector.broadcast %cst_44 : f32 to vector<2x128xf32>
    %126 = arith.addf %125, %124 : vector<2x128xf32>
    %127 = arith.divf %125, %126 : vector<2x128xf32>
    %128 = math.tanh %122 : vector<2x128xf32>
    %129 = vector.extract_strided_slice %127 {offsets = [0, 0], sizes = [2, 32], strides = [1, 1]} : vector<2x128xf32> to vector<2x32xf32>
    %130 = vector.extract_strided_slice %127 {offsets = [0, 32], sizes = [2, 32], strides = [1, 1]} : vector<2x128xf32> to vector<2x32xf32>
    %131 = vector.extract_strided_slice %128 {offsets = [0, 64], sizes = [2, 32], strides = [1, 1]} : vector<2x128xf32> to vector<2x32xf32>
    %132 = vector.extract_strided_slice %127 {offsets = [0, 96], sizes = [2, 32], strides = [1, 1]} : vector<2x128xf32> to vector<2x32xf32>
    %133 = arith.mulf %130, %113 : vector<2x32xf32>
    %134 = arith.mulf %129, %131 : vector<2x32xf32>
    %135 = arith.addf %133, %134 : vector<2x32xf32>
    %136 = math.tanh %135 : vector<2x32xf32>
    %137 = arith.mulf %132, %136 : vector<2x32xf32>
    %138 = vector.extract_strided_slice %137 {offsets = [0, 0], sizes = [1, 32], strides = [1, 1]} : vector<2x32xf32> to vector<1x32xf32>
    %c5_45 = arith.constant 5 : index
    %c0_46 = arith.constant 0 : index
    %139 = vector.load %arg11[%c5_45, %c0_46] : memref<16x32xf32, #tpu.memory_space<vmem>>, vector<1x32xf32>
    tpu.vector_store %arg11[%c5_45, %c0_46], %138 {strides = array<i32>} : memref<16x32xf32, #tpu.memory_space<vmem>>, vector<1x32xf32>,
    %140 = vector.extract_strided_slice %137 {offsets = [1, 0], sizes = [1, 32], strides = [1, 1]} : vector<2x32xf32> to vector<1x32xf32>
    %c13 = arith.constant 13 : index
    %c0_47 = arith.constant 0 : index
    %141 = vector.load %arg11[%c13, %c0_47] : memref<16x32xf32, #tpu.memory_space<vmem>>, vector<1x32xf32>
    tpu.vector_store %arg11[%c13, %c0_47], %140 {strides = array<i32>} : memref<16x32xf32, #tpu.memory_space<vmem>>, vector<1x32xf32>,
    %c6 = arith.constant 6 : index
    %c0_48 = arith.constant 0 : index
    %142 = tpu.strided_load %arg10[%c6, %c0_48] {strides = array<i32: 8, 1>} : memref<16x128xf32, #tpu.memory_space<vmem>>, vector<2x128xf32>
    %cst_49 = arith.constant dense<0.000000e+00> : vector<2x128xf32>
    %143 = tpu.matmul %137, %7, %cst_49 {dimension_numbers = #tpu.dot_dimension_numbers<[1], [0], [0], [1], [0, 0, 1, 1], [], []>} : vector<2x32xf32>, vector<32x128xf32>, vector<2x128xf32> -> vector<2x128xf32>
    %144 = arith.addf %142, %143 : vector<2x128xf32>
    %145 = arith.negf %144 : vector<2x128xf32>
    %146 = math.exp %145 : vector<2x128xf32>
    %cst_50 = arith.constant 1.000000e+00 : f32
    %147 = vector.broadcast %cst_50 : f32 to vector<2x128xf32>
    %148 = arith.addf %147, %146 : vector<2x128xf32>
    %149 = arith.divf %147, %148 : vector<2x128xf32>
    %150 = math.tanh %144 : vector<2x128xf32>
    %151 = vector.extract_strided_slice %149 {offsets = [0, 0], sizes = [2, 32], strides = [1, 1]} : vector<2x128xf32> to vector<2x32xf32>
    %152 = vector.extract_strided_slice %149 {offsets = [0, 32], sizes = [2, 32], strides = [1, 1]} : vector<2x128xf32> to vector<2x32xf32>
    %153 = vector.extract_strided_slice %150 {offsets = [0, 64], sizes = [2, 32], strides = [1, 1]} : vector<2x128xf32> to vector<2x32xf32>
    %154 = vector.extract_strided_slice %149 {offsets = [0, 96], sizes = [2, 32], strides = [1, 1]} : vector<2x128xf32> to vector<2x32xf32>
    %155 = arith.mulf %152, %135 : vector<2x32xf32>
    %156 = arith.mulf %151, %153 : vector<2x32xf32>
    %157 = arith.addf %155, %156 : vector<2x32xf32>
    %158 = math.tanh %157 : vector<2x32xf32>
    %159 = arith.mulf %154, %158 : vector<2x32xf32>
    %160 = vector.extract_strided_slice %159 {offsets = [0, 0], sizes = [1, 32], strides = [1, 1]} : vector<2x32xf32> to vector<1x32xf32>
    %c6_51 = arith.constant 6 : index
    %c0_52 = arith.constant 0 : index
    %161 = vector.load %arg11[%c6_51, %c0_52] : memref<16x32xf32, #tpu.memory_space<vmem>>, vector<1x32xf32>
    tpu.vector_store %arg11[%c6_51, %c0_52], %160 {strides = array<i32>} : memref<16x32xf32, #tpu.memory_space<vmem>>, vector<1x32xf32>,
    %162 = vector.extract_strided_slice %159 {offsets = [1, 0], sizes = [1, 32], strides = [1, 1]} : vector<2x32xf32> to vector<1x32xf32>
    %c14 = arith.constant 14 : index
    %c0_53 = arith.constant 0 : index
    %163 = vector.load %arg11[%c14, %c0_53] : memref<16x32xf32, #tpu.memory_space<vmem>>, vector<1x32xf32>
    tpu.vector_store %arg11[%c14, %c0_53], %162 {strides = array<i32>} : memref<16x32xf32, #tpu.memory_space<vmem>>, vector<1x32xf32>,
    %c7 = arith.constant 7 : index
    %c0_54 = arith.constant 0 : index
    %164 = tpu.strided_load %arg10[%c7, %c0_54] {strides = array<i32: 8, 1>} : memref<16x128xf32, #tpu.memory_space<vmem>>, vector<2x128xf32>
    %cst_55 = arith.constant dense<0.000000e+00> : vector<2x128xf32>
    %165 = tpu.matmul %159, %7, %cst_55 {dimension_numbers = #tpu.dot_dimension_numbers<[1], [0], [0], [1], [0, 0, 1, 1], [], []>} : vector<2x32xf32>, vector<32x128xf32>, vector<2x128xf32> -> vector<2x128xf32>
    %166 = arith.addf %164, %165 : vector<2x128xf32>
    %167 = arith.negf %166 : vector<2x128xf32>
    %168 = math.exp %167 : vector<2x128xf32>
    %cst_56 = arith.constant 1.000000e+00 : f32
    %169 = vector.broadcast %cst_56 : f32 to vector<2x128xf32>
    %170 = arith.addf %169, %168 : vector<2x128xf32>
    %171 = arith.divf %169, %170 : vector<2x128xf32>
    %172 = math.tanh %166 : vector<2x128xf32>
    %173 = vector.extract_strided_slice %171 {offsets = [0, 0], sizes = [2, 32], strides = [1, 1]} : vector<2x128xf32> to vector<2x32xf32>
    %174 = vector.extract_strided_slice %171 {offsets = [0, 32], sizes = [2, 32], strides = [1, 1]} : vector<2x128xf32> to vector<2x32xf32>
    %175 = vector.extract_strided_slice %172 {offsets = [0, 64], sizes = [2, 32], strides = [1, 1]} : vector<2x128xf32> to vector<2x32xf32>
    %176 = vector.extract_strided_slice %171 {offsets = [0, 96], sizes = [2, 32], strides = [1, 1]} : vector<2x128xf32> to vector<2x32xf32>
    %177 = arith.mulf %174, %157 : vector<2x32xf32>
    %178 = arith.mulf %173, %175 : vector<2x32xf32>
    %179 = arith.addf %177, %178 : vector<2x32xf32>
    %180 = math.tanh %179 : vector<2x32xf32>
    %181 = arith.mulf %176, %180 : vector<2x32xf32>
    %182 = vector.extract_strided_slice %181 {offsets = [0, 0], sizes = [1, 32], strides = [1, 1]} : vector<2x32xf32> to vector<1x32xf32>
    %c7_57 = arith.constant 7 : index
    %c0_58 = arith.constant 0 : index
    %183 = vector.load %arg11[%c7_57, %c0_58] : memref<16x32xf32, #tpu.memory_space<vmem>>, vector<1x32xf32>
    tpu.vector_store %arg11[%c7_57, %c0_58], %182 {strides = array<i32>} : memref<16x32xf32, #tpu.memory_space<vmem>>, vector<1x32xf32>,
    %184 = vector.extract_strided_slice %181 {offsets = [1, 0], sizes = [1, 32], strides = [1, 1]} : vector<2x32xf32> to vector<1x32xf32>
    %c15 = arith.constant 15 : index
    %c0_59 = arith.constant 0 : index
    %185 = vector.load %arg11[%c15, %c0_59] : memref<16x32xf32, #tpu.memory_space<vmem>>, vector<1x32xf32>
    tpu.vector_store %arg11[%c15, %c0_59], %184 {strides = array<i32>} : memref<16x32xf32, #tpu.memory_space<vmem>>, vector<1x32xf32>,
    %c0_60 = arith.constant 0 : index
    %c0_61 = arith.constant 0 : index
    %186 = vector.load %arg11[%c0_60, %c0_61] : memref<16x32xf32, #tpu.memory_space<vmem>>, vector<16x32xf32>
    %c0_62 = arith.constant 0 : index
    %c0_63 = arith.constant 0 : index
    %187 = vector.load %arg4[%c0_62, %c0_63] : memref<32x128xf32, #tpu.memory_space<vmem>>, vector<32x128xf32>
    %cst_64 = arith.constant dense<0.000000e+00> : vector<16x128xf32>
    %188 = tpu.matmul %186, %187, %cst_64 {dimension_numbers = #tpu.dot_dimension_numbers<[1], [0], [0], [1], [0, 0, 1, 1], [], []>} : vector<16x32xf32>, vector<32x128xf32>, vector<16x128xf32> -> vector<16x128xf32>
    %c0_65 = arith.constant 0 : index
    %c0_66 = arith.constant 0 : index
    %189 = vector.load %arg6[%c0_65, %c0_66] : memref<1x128xf32, #tpu.memory_space<vmem>>, vector<1x128xf32>
    %190 = vector.broadcast %189 : vector<1x128xf32> to vector<16x128xf32>
    %191 = arith.addf %188, %190 : vector<16x128xf32>
    %c0_67 = arith.constant 0 : index
    %c0_68 = arith.constant 0 : index
    %192 = vector.load %arg10[%c0_67, %c0_68] : memref<16x128xf32, #tpu.memory_space<vmem>>, vector<16x128xf32>
    tpu.vector_store %arg10[%c0_67, %c0_68], %191 {strides = array<i32>} : memref<16x128xf32, #tpu.memory_space<vmem>>, vector<16x128xf32>,
    %c0_69 = arith.constant 0 : index
    %c0_70 = arith.constant 0 : index
    %193 = vector.load %arg5[%c0_69, %c0_70] : memref<32x128xf32, #tpu.memory_space<vmem>>, vector<32x128xf32>
    %cst_71 = arith.constant 0.000000e+00 : f32
    %194 = vector.broadcast %cst_71 : f32 to vector<2x32xf32>
    %cst_72 = arith.constant 0.000000e+00 : f32
    %195 = vector.broadcast %cst_72 : f32 to vector<2x32xf32>
    %c0_73 = arith.constant 0 : index
    %c0_74 = arith.constant 0 : index
    %196 = tpu.strided_load %arg10[%c0_73, %c0_74] {strides = array<i32: 8, 1>} : memref<16x128xf32, #tpu.memory_space<vmem>>, vector<2x128xf32>
    %cst_75 = arith.constant dense<0.000000e+00> : vector<2x128xf32>
    %197 = tpu.matmul %194, %193, %cst_75 {dimension_numbers = #tpu.dot_dimension_numbers<[1], [0], [0], [1], [0, 0, 1, 1], [], []>} : vector<2x32xf32>, vector<32x128xf32>, vector<2x128xf32> -> vector<2x128xf32>
    %198 = arith.addf %196, %197 : vector<2x128xf32>
    %199 = arith.negf %198 : vector<2x128xf32>
    %200 = math.exp %199 : vector<2x128xf32>
    %cst_76 = arith.constant 1.000000e+00 : f32
    %201 = vector.broadcast %cst_76 : f32 to vector<2x128xf32>
    %202 = arith.addf %201, %200 : vector<2x128xf32>
    %203 = arith.divf %201, %202 : vector<2x128xf32>
    %204 = math.tanh %198 : vector<2x128xf32>
    %205 = vector.extract_strided_slice %203 {offsets = [0, 0], sizes = [2, 32], strides = [1, 1]} : vector<2x128xf32> to vector<2x32xf32>
    %206 = vector.extract_strided_slice %203 {offsets = [0, 32], sizes = [2, 32], strides = [1, 1]} : vector<2x128xf32> to vector<2x32xf32>
    %207 = vector.extract_strided_slice %204 {offsets = [0, 64], sizes = [2, 32], strides = [1, 1]} : vector<2x128xf32> to vector<2x32xf32>
    %208 = vector.extract_strided_slice %203 {offsets = [0, 96], sizes = [2, 32], strides = [1, 1]} : vector<2x128xf32> to vector<2x32xf32>
    %209 = arith.mulf %206, %195 : vector<2x32xf32>
    %210 = arith.mulf %205, %207 : vector<2x32xf32>
    %211 = arith.addf %209, %210 : vector<2x32xf32>
    %212 = math.tanh %211 : vector<2x32xf32>
    %213 = arith.mulf %208, %212 : vector<2x32xf32>
    %214 = vector.extract_strided_slice %213 {offsets = [0, 0], sizes = [1, 32], strides = [1, 1]} : vector<2x32xf32> to vector<1x32xf32>
    %c0_77 = arith.constant 0 : index
    %c0_78 = arith.constant 0 : index
    %215 = vector.load %arg11[%c0_77, %c0_78] : memref<16x32xf32, #tpu.memory_space<vmem>>, vector<1x32xf32>
    tpu.vector_store %arg11[%c0_77, %c0_78], %214 {strides = array<i32>} : memref<16x32xf32, #tpu.memory_space<vmem>>, vector<1x32xf32>,
    %216 = vector.extract_strided_slice %213 {offsets = [1, 0], sizes = [1, 32], strides = [1, 1]} : vector<2x32xf32> to vector<1x32xf32>
    %c8_79 = arith.constant 8 : index
    %c0_80 = arith.constant 0 : index
    %217 = vector.load %arg11[%c8_79, %c0_80] : memref<16x32xf32, #tpu.memory_space<vmem>>, vector<1x32xf32>
    tpu.vector_store %arg11[%c8_79, %c0_80], %216 {strides = array<i32>} : memref<16x32xf32, #tpu.memory_space<vmem>>, vector<1x32xf32>,
    %c1_81 = arith.constant 1 : index
    %c0_82 = arith.constant 0 : index
    %218 = tpu.strided_load %arg10[%c1_81, %c0_82] {strides = array<i32: 8, 1>} : memref<16x128xf32, #tpu.memory_space<vmem>>, vector<2x128xf32>
    %cst_83 = arith.constant dense<0.000000e+00> : vector<2x128xf32>
    %219 = tpu.matmul %213, %193, %cst_83 {dimension_numbers = #tpu.dot_dimension_numbers<[1], [0], [0], [1], [0, 0, 1, 1], [], []>} : vector<2x32xf32>, vector<32x128xf32>, vector<2x128xf32> -> vector<2x128xf32>
    %220 = arith.addf %218, %219 : vector<2x128xf32>
    %221 = arith.negf %220 : vector<2x128xf32>
    %222 = math.exp %221 : vector<2x128xf32>
    %cst_84 = arith.constant 1.000000e+00 : f32
    %223 = vector.broadcast %cst_84 : f32 to vector<2x128xf32>
    %224 = arith.addf %223, %222 : vector<2x128xf32>
    %225 = arith.divf %223, %224 : vector<2x128xf32>
    %226 = math.tanh %220 : vector<2x128xf32>
    %227 = vector.extract_strided_slice %225 {offsets = [0, 0], sizes = [2, 32], strides = [1, 1]} : vector<2x128xf32> to vector<2x32xf32>
    %228 = vector.extract_strided_slice %225 {offsets = [0, 32], sizes = [2, 32], strides = [1, 1]} : vector<2x128xf32> to vector<2x32xf32>
    %229 = vector.extract_strided_slice %226 {offsets = [0, 64], sizes = [2, 32], strides = [1, 1]} : vector<2x128xf32> to vector<2x32xf32>
    %230 = vector.extract_strided_slice %225 {offsets = [0, 96], sizes = [2, 32], strides = [1, 1]} : vector<2x128xf32> to vector<2x32xf32>
    %231 = arith.mulf %228, %211 : vector<2x32xf32>
    %232 = arith.mulf %227, %229 : vector<2x32xf32>
    %233 = arith.addf %231, %232 : vector<2x32xf32>
    %234 = math.tanh %233 : vector<2x32xf32>
    %235 = arith.mulf %230, %234 : vector<2x32xf32>
    %236 = vector.extract_strided_slice %235 {offsets = [0, 0], sizes = [1, 32], strides = [1, 1]} : vector<2x32xf32> to vector<1x32xf32>
    %c1_85 = arith.constant 1 : index
    %c0_86 = arith.constant 0 : index
    %237 = vector.load %arg11[%c1_85, %c0_86] : memref<16x32xf32, #tpu.memory_space<vmem>>, vector<1x32xf32>
    tpu.vector_store %arg11[%c1_85, %c0_86], %236 {strides = array<i32>} : memref<16x32xf32, #tpu.memory_space<vmem>>, vector<1x32xf32>,
    %238 = vector.extract_strided_slice %235 {offsets = [1, 0], sizes = [1, 32], strides = [1, 1]} : vector<2x32xf32> to vector<1x32xf32>
    %c9_87 = arith.constant 9 : index
    %c0_88 = arith.constant 0 : index
    %239 = vector.load %arg11[%c9_87, %c0_88] : memref<16x32xf32, #tpu.memory_space<vmem>>, vector<1x32xf32>
    tpu.vector_store %arg11[%c9_87, %c0_88], %238 {strides = array<i32>} : memref<16x32xf32, #tpu.memory_space<vmem>>, vector<1x32xf32>,
    %c2_89 = arith.constant 2 : index
    %c0_90 = arith.constant 0 : index
    %240 = tpu.strided_load %arg10[%c2_89, %c0_90] {strides = array<i32: 8, 1>} : memref<16x128xf32, #tpu.memory_space<vmem>>, vector<2x128xf32>
    %cst_91 = arith.constant dense<0.000000e+00> : vector<2x128xf32>
    %241 = tpu.matmul %235, %193, %cst_91 {dimension_numbers = #tpu.dot_dimension_numbers<[1], [0], [0], [1], [0, 0, 1, 1], [], []>} : vector<2x32xf32>, vector<32x128xf32>, vector<2x128xf32> -> vector<2x128xf32>
    %242 = arith.addf %240, %241 : vector<2x128xf32>
    %243 = arith.negf %242 : vector<2x128xf32>
    %244 = math.exp %243 : vector<2x128xf32>
    %cst_92 = arith.constant 1.000000e+00 : f32
    %245 = vector.broadcast %cst_92 : f32 to vector<2x128xf32>
    %246 = arith.addf %245, %244 : vector<2x128xf32>
    %247 = arith.divf %245, %246 : vector<2x128xf32>
    %248 = math.tanh %242 : vector<2x128xf32>
    %249 = vector.extract_strided_slice %247 {offsets = [0, 0], sizes = [2, 32], strides = [1, 1]} : vector<2x128xf32> to vector<2x32xf32>
    %250 = vector.extract_strided_slice %247 {offsets = [0, 32], sizes = [2, 32], strides = [1, 1]} : vector<2x128xf32> to vector<2x32xf32>
    %251 = vector.extract_strided_slice %248 {offsets = [0, 64], sizes = [2, 32], strides = [1, 1]} : vector<2x128xf32> to vector<2x32xf32>
    %252 = vector.extract_strided_slice %247 {offsets = [0, 96], sizes = [2, 32], strides = [1, 1]} : vector<2x128xf32> to vector<2x32xf32>
    %253 = arith.mulf %250, %233 : vector<2x32xf32>
    %254 = arith.mulf %249, %251 : vector<2x32xf32>
    %255 = arith.addf %253, %254 : vector<2x32xf32>
    %256 = math.tanh %255 : vector<2x32xf32>
    %257 = arith.mulf %252, %256 : vector<2x32xf32>
    %258 = vector.extract_strided_slice %257 {offsets = [0, 0], sizes = [1, 32], strides = [1, 1]} : vector<2x32xf32> to vector<1x32xf32>
    %c2_93 = arith.constant 2 : index
    %c0_94 = arith.constant 0 : index
    %259 = vector.load %arg11[%c2_93, %c0_94] : memref<16x32xf32, #tpu.memory_space<vmem>>, vector<1x32xf32>
    tpu.vector_store %arg11[%c2_93, %c0_94], %258 {strides = array<i32>} : memref<16x32xf32, #tpu.memory_space<vmem>>, vector<1x32xf32>,
    %260 = vector.extract_strided_slice %257 {offsets = [1, 0], sizes = [1, 32], strides = [1, 1]} : vector<2x32xf32> to vector<1x32xf32>
    %c10_95 = arith.constant 10 : index
    %c0_96 = arith.constant 0 : index
    %261 = vector.load %arg11[%c10_95, %c0_96] : memref<16x32xf32, #tpu.memory_space<vmem>>, vector<1x32xf32>
    tpu.vector_store %arg11[%c10_95, %c0_96], %260 {strides = array<i32>} : memref<16x32xf32, #tpu.memory_space<vmem>>, vector<1x32xf32>,
    %c3_97 = arith.constant 3 : index
    %c0_98 = arith.constant 0 : index
    %262 = tpu.strided_load %arg10[%c3_97, %c0_98] {strides = array<i32: 8, 1>} : memref<16x128xf32, #tpu.memory_space<vmem>>, vector<2x128xf32>
    %cst_99 = arith.constant dense<0.000000e+00> : vector<2x128xf32>
    %263 = tpu.matmul %257, %193, %cst_99 {dimension_numbers = #tpu.dot_dimension_numbers<[1], [0], [0], [1], [0, 0, 1, 1], [], []>} : vector<2x32xf32>, vector<32x128xf32>, vector<2x128xf32> -> vector<2x128xf32>
    %264 = arith.addf %262, %263 : vector<2x128xf32>
    %265 = arith.negf %264 : vector<2x128xf32>
    %266 = math.exp %265 : vector<2x128xf32>
    %cst_100 = arith.constant 1.000000e+00 : f32
    %267 = vector.broadcast %cst_100 : f32 to vector<2x128xf32>
    %268 = arith.addf %267, %266 : vector<2x128xf32>
    %269 = arith.divf %267, %268 : vector<2x128xf32>
    %270 = math.tanh %264 : vector<2x128xf32>
    %271 = vector.extract_strided_slice %269 {offsets = [0, 0], sizes = [2, 32], strides = [1, 1]} : vector<2x128xf32> to vector<2x32xf32>
    %272 = vector.extract_strided_slice %269 {offsets = [0, 32], sizes = [2, 32], strides = [1, 1]} : vector<2x128xf32> to vector<2x32xf32>
    %273 = vector.extract_strided_slice %270 {offsets = [0, 64], sizes = [2, 32], strides = [1, 1]} : vector<2x128xf32> to vector<2x32xf32>
    %274 = vector.extract_strided_slice %269 {offsets = [0, 96], sizes = [2, 32], strides = [1, 1]} : vector<2x128xf32> to vector<2x32xf32>
    %275 = arith.mulf %272, %255 : vector<2x32xf32>
    %276 = arith.mulf %271, %273 : vector<2x32xf32>
    %277 = arith.addf %275, %276 : vector<2x32xf32>
    %278 = math.tanh %277 : vector<2x32xf32>
    %279 = arith.mulf %274, %278 : vector<2x32xf32>
    %280 = vector.extract_strided_slice %279 {offsets = [0, 0], sizes = [1, 32], strides = [1, 1]} : vector<2x32xf32> to vector<1x32xf32>
    %c3_101 = arith.constant 3 : index
    %c0_102 = arith.constant 0 : index
    %281 = vector.load %arg11[%c3_101, %c0_102] : memref<16x32xf32, #tpu.memory_space<vmem>>, vector<1x32xf32>
    tpu.vector_store %arg11[%c3_101, %c0_102], %280 {strides = array<i32>} : memref<16x32xf32, #tpu.memory_space<vmem>>, vector<1x32xf32>,
    %282 = vector.extract_strided_slice %279 {offsets = [1, 0], sizes = [1, 32], strides = [1, 1]} : vector<2x32xf32> to vector<1x32xf32>
    %c11_103 = arith.constant 11 : index
    %c0_104 = arith.constant 0 : index
    %283 = vector.load %arg11[%c11_103, %c0_104] : memref<16x32xf32, #tpu.memory_space<vmem>>, vector<1x32xf32>
    tpu.vector_store %arg11[%c11_103, %c0_104], %282 {strides = array<i32>} : memref<16x32xf32, #tpu.memory_space<vmem>>, vector<1x32xf32>,
    %c4_105 = arith.constant 4 : index
    %c0_106 = arith.constant 0 : index
    %284 = tpu.strided_load %arg10[%c4_105, %c0_106] {strides = array<i32: 8, 1>} : memref<16x128xf32, #tpu.memory_space<vmem>>, vector<2x128xf32>
    %cst_107 = arith.constant dense<0.000000e+00> : vector<2x128xf32>
    %285 = tpu.matmul %279, %193, %cst_107 {dimension_numbers = #tpu.dot_dimension_numbers<[1], [0], [0], [1], [0, 0, 1, 1], [], []>} : vector<2x32xf32>, vector<32x128xf32>, vector<2x128xf32> -> vector<2x128xf32>
    %286 = arith.addf %284, %285 : vector<2x128xf32>
    %287 = arith.negf %286 : vector<2x128xf32>
    %288 = math.exp %287 : vector<2x128xf32>
    %cst_108 = arith.constant 1.000000e+00 : f32
    %289 = vector.broadcast %cst_108 : f32 to vector<2x128xf32>
    %290 = arith.addf %289, %288 : vector<2x128xf32>
    %291 = arith.divf %289, %290 : vector<2x128xf32>
    %292 = math.tanh %286 : vector<2x128xf32>
    %293 = vector.extract_strided_slice %291 {offsets = [0, 0], sizes = [2, 32], strides = [1, 1]} : vector<2x128xf32> to vector<2x32xf32>
    %294 = vector.extract_strided_slice %291 {offsets = [0, 32], sizes = [2, 32], strides = [1, 1]} : vector<2x128xf32> to vector<2x32xf32>
    %295 = vector.extract_strided_slice %292 {offsets = [0, 64], sizes = [2, 32], strides = [1, 1]} : vector<2x128xf32> to vector<2x32xf32>
    %296 = vector.extract_strided_slice %291 {offsets = [0, 96], sizes = [2, 32], strides = [1, 1]} : vector<2x128xf32> to vector<2x32xf32>
    %297 = arith.mulf %294, %277 : vector<2x32xf32>
    %298 = arith.mulf %293, %295 : vector<2x32xf32>
    %299 = arith.addf %297, %298 : vector<2x32xf32>
    %300 = math.tanh %299 : vector<2x32xf32>
    %301 = arith.mulf %296, %300 : vector<2x32xf32>
    %302 = vector.extract_strided_slice %301 {offsets = [0, 0], sizes = [1, 32], strides = [1, 1]} : vector<2x32xf32> to vector<1x32xf32>
    %c4_109 = arith.constant 4 : index
    %c0_110 = arith.constant 0 : index
    %303 = vector.load %arg11[%c4_109, %c0_110] : memref<16x32xf32, #tpu.memory_space<vmem>>, vector<1x32xf32>
    tpu.vector_store %arg11[%c4_109, %c0_110], %302 {strides = array<i32>} : memref<16x32xf32, #tpu.memory_space<vmem>>, vector<1x32xf32>,
    %304 = vector.extract_strided_slice %301 {offsets = [1, 0], sizes = [1, 32], strides = [1, 1]} : vector<2x32xf32> to vector<1x32xf32>
    %c12_111 = arith.constant 12 : index
    %c0_112 = arith.constant 0 : index
    %305 = vector.load %arg11[%c12_111, %c0_112] : memref<16x32xf32, #tpu.memory_space<vmem>>, vector<1x32xf32>
    tpu.vector_store %arg11[%c12_111, %c0_112], %304 {strides = array<i32>} : memref<16x32xf32, #tpu.memory_space<vmem>>, vector<1x32xf32>,
    %c5_113 = arith.constant 5 : index
    %c0_114 = arith.constant 0 : index
    %306 = tpu.strided_load %arg10[%c5_113, %c0_114] {strides = array<i32: 8, 1>} : memref<16x128xf32, #tpu.memory_space<vmem>>, vector<2x128xf32>
    %cst_115 = arith.constant dense<0.000000e+00> : vector<2x128xf32>
    %307 = tpu.matmul %301, %193, %cst_115 {dimension_numbers = #tpu.dot_dimension_numbers<[1], [0], [0], [1], [0, 0, 1, 1], [], []>} : vector<2x32xf32>, vector<32x128xf32>, vector<2x128xf32> -> vector<2x128xf32>
    %308 = arith.addf %306, %307 : vector<2x128xf32>
    %309 = arith.negf %308 : vector<2x128xf32>
    %310 = math.exp %309 : vector<2x128xf32>
    %cst_116 = arith.constant 1.000000e+00 : f32
    %311 = vector.broadcast %cst_116 : f32 to vector<2x128xf32>
    %312 = arith.addf %311, %310 : vector<2x128xf32>
    %313 = arith.divf %311, %312 : vector<2x128xf32>
    %314 = math.tanh %308 : vector<2x128xf32>
    %315 = vector.extract_strided_slice %313 {offsets = [0, 0], sizes = [2, 32], strides = [1, 1]} : vector<2x128xf32> to vector<2x32xf32>
    %316 = vector.extract_strided_slice %313 {offsets = [0, 32], sizes = [2, 32], strides = [1, 1]} : vector<2x128xf32> to vector<2x32xf32>
    %317 = vector.extract_strided_slice %314 {offsets = [0, 64], sizes = [2, 32], strides = [1, 1]} : vector<2x128xf32> to vector<2x32xf32>
    %318 = vector.extract_strided_slice %313 {offsets = [0, 96], sizes = [2, 32], strides = [1, 1]} : vector<2x128xf32> to vector<2x32xf32>
    %319 = arith.mulf %316, %299 : vector<2x32xf32>
    %320 = arith.mulf %315, %317 : vector<2x32xf32>
    %321 = arith.addf %319, %320 : vector<2x32xf32>
    %322 = math.tanh %321 : vector<2x32xf32>
    %323 = arith.mulf %318, %322 : vector<2x32xf32>
    %324 = vector.extract_strided_slice %323 {offsets = [0, 0], sizes = [1, 32], strides = [1, 1]} : vector<2x32xf32> to vector<1x32xf32>
    %c5_117 = arith.constant 5 : index
    %c0_118 = arith.constant 0 : index
    %325 = vector.load %arg11[%c5_117, %c0_118] : memref<16x32xf32, #tpu.memory_space<vmem>>, vector<1x32xf32>
    tpu.vector_store %arg11[%c5_117, %c0_118], %324 {strides = array<i32>} : memref<16x32xf32, #tpu.memory_space<vmem>>, vector<1x32xf32>,
    %326 = vector.extract_strided_slice %323 {offsets = [1, 0], sizes = [1, 32], strides = [1, 1]} : vector<2x32xf32> to vector<1x32xf32>
    %c13_119 = arith.constant 13 : index
    %c0_120 = arith.constant 0 : index
    %327 = vector.load %arg11[%c13_119, %c0_120] : memref<16x32xf32, #tpu.memory_space<vmem>>, vector<1x32xf32>
    tpu.vector_store %arg11[%c13_119, %c0_120], %326 {strides = array<i32>} : memref<16x32xf32, #tpu.memory_space<vmem>>, vector<1x32xf32>,
    %c6_121 = arith.constant 6 : index
    %c0_122 = arith.constant 0 : index
    %328 = tpu.strided_load %arg10[%c6_121, %c0_122] {strides = array<i32: 8, 1>} : memref<16x128xf32, #tpu.memory_space<vmem>>, vector<2x128xf32>
    %cst_123 = arith.constant dense<0.000000e+00> : vector<2x128xf32>
    %329 = tpu.matmul %323, %193, %cst_123 {dimension_numbers = #tpu.dot_dimension_numbers<[1], [0], [0], [1], [0, 0, 1, 1], [], []>} : vector<2x32xf32>, vector<32x128xf32>, vector<2x128xf32> -> vector<2x128xf32>
    %330 = arith.addf %328, %329 : vector<2x128xf32>
    %331 = arith.negf %330 : vector<2x128xf32>
    %332 = math.exp %331 : vector<2x128xf32>
    %cst_124 = arith.constant 1.000000e+00 : f32
    %333 = vector.broadcast %cst_124 : f32 to vector<2x128xf32>
    %334 = arith.addf %333, %332 : vector<2x128xf32>
    %335 = arith.divf %333, %334 : vector<2x128xf32>
    %336 = math.tanh %330 : vector<2x128xf32>
    %337 = vector.extract_strided_slice %335 {offsets = [0, 0], sizes = [2, 32], strides = [1, 1]} : vector<2x128xf32> to vector<2x32xf32>
    %338 = vector.extract_strided_slice %335 {offsets = [0, 32], sizes = [2, 32], strides = [1, 1]} : vector<2x128xf32> to vector<2x32xf32>
    %339 = vector.extract_strided_slice %336 {offsets = [0, 64], sizes = [2, 32], strides = [1, 1]} : vector<2x128xf32> to vector<2x32xf32>
    %340 = vector.extract_strided_slice %335 {offsets = [0, 96], sizes = [2, 32], strides = [1, 1]} : vector<2x128xf32> to vector<2x32xf32>
    %341 = arith.mulf %338, %321 : vector<2x32xf32>
    %342 = arith.mulf %337, %339 : vector<2x32xf32>
    %343 = arith.addf %341, %342 : vector<2x32xf32>
    %344 = math.tanh %343 : vector<2x32xf32>
    %345 = arith.mulf %340, %344 : vector<2x32xf32>
    %346 = vector.extract_strided_slice %345 {offsets = [0, 0], sizes = [1, 32], strides = [1, 1]} : vector<2x32xf32> to vector<1x32xf32>
    %c6_125 = arith.constant 6 : index
    %c0_126 = arith.constant 0 : index
    %347 = vector.load %arg11[%c6_125, %c0_126] : memref<16x32xf32, #tpu.memory_space<vmem>>, vector<1x32xf32>
    tpu.vector_store %arg11[%c6_125, %c0_126], %346 {strides = array<i32>} : memref<16x32xf32, #tpu.memory_space<vmem>>, vector<1x32xf32>,
    %348 = vector.extract_strided_slice %345 {offsets = [1, 0], sizes = [1, 32], strides = [1, 1]} : vector<2x32xf32> to vector<1x32xf32>
    %c14_127 = arith.constant 14 : index
    %c0_128 = arith.constant 0 : index
    %349 = vector.load %arg11[%c14_127, %c0_128] : memref<16x32xf32, #tpu.memory_space<vmem>>, vector<1x32xf32>
    tpu.vector_store %arg11[%c14_127, %c0_128], %348 {strides = array<i32>} : memref<16x32xf32, #tpu.memory_space<vmem>>, vector<1x32xf32>,
    %c7_129 = arith.constant 7 : index
    %c0_130 = arith.constant 0 : index
    %350 = tpu.strided_load %arg10[%c7_129, %c0_130] {strides = array<i32: 8, 1>} : memref<16x128xf32, #tpu.memory_space<vmem>>, vector<2x128xf32>
    %cst_131 = arith.constant dense<0.000000e+00> : vector<2x128xf32>
    %351 = tpu.matmul %345, %193, %cst_131 {dimension_numbers = #tpu.dot_dimension_numbers<[1], [0], [0], [1], [0, 0, 1, 1], [], []>} : vector<2x32xf32>, vector<32x128xf32>, vector<2x128xf32> -> vector<2x128xf32>
    %352 = arith.addf %350, %351 : vector<2x128xf32>
    %353 = arith.negf %352 : vector<2x128xf32>
    %354 = math.exp %353 : vector<2x128xf32>
    %cst_132 = arith.constant 1.000000e+00 : f32
    %355 = vector.broadcast %cst_132 : f32 to vector<2x128xf32>
    %356 = arith.addf %355, %354 : vector<2x128xf32>
    %357 = arith.divf %355, %356 : vector<2x128xf32>
    %358 = math.tanh %352 : vector<2x128xf32>
    %359 = vector.extract_strided_slice %357 {offsets = [0, 0], sizes = [2, 32], strides = [1, 1]} : vector<2x128xf32> to vector<2x32xf32>
    %360 = vector.extract_strided_slice %357 {offsets = [0, 32], sizes = [2, 32], strides = [1, 1]} : vector<2x128xf32> to vector<2x32xf32>
    %361 = vector.extract_strided_slice %358 {offsets = [0, 64], sizes = [2, 32], strides = [1, 1]} : vector<2x128xf32> to vector<2x32xf32>
    %362 = vector.extract_strided_slice %357 {offsets = [0, 96], sizes = [2, 32], strides = [1, 1]} : vector<2x128xf32> to vector<2x32xf32>
    %363 = arith.mulf %360, %343 : vector<2x32xf32>
    %364 = arith.mulf %359, %361 : vector<2x32xf32>
    %365 = arith.addf %363, %364 : vector<2x32xf32>
    %366 = math.tanh %365 : vector<2x32xf32>
    %367 = arith.mulf %362, %366 : vector<2x32xf32>
    %368 = vector.extract_strided_slice %367 {offsets = [0, 0], sizes = [1, 32], strides = [1, 1]} : vector<2x32xf32> to vector<1x32xf32>
    %c7_133 = arith.constant 7 : index
    %c0_134 = arith.constant 0 : index
    %369 = vector.load %arg11[%c7_133, %c0_134] : memref<16x32xf32, #tpu.memory_space<vmem>>, vector<1x32xf32>
    tpu.vector_store %arg11[%c7_133, %c0_134], %368 {strides = array<i32>} : memref<16x32xf32, #tpu.memory_space<vmem>>, vector<1x32xf32>,
    %370 = vector.extract_strided_slice %367 {offsets = [1, 0], sizes = [1, 32], strides = [1, 1]} : vector<2x32xf32> to vector<1x32xf32>
    %c15_135 = arith.constant 15 : index
    %c0_136 = arith.constant 0 : index
    %371 = vector.load %arg11[%c15_135, %c0_136] : memref<16x32xf32, #tpu.memory_space<vmem>>, vector<1x32xf32>
    tpu.vector_store %arg11[%c15_135, %c0_136], %370 {strides = array<i32>} : memref<16x32xf32, #tpu.memory_space<vmem>>, vector<1x32xf32>,
    %c0_137 = arith.constant 0 : index
    %c0_138 = arith.constant 0 : index
    %372 = vector.load %arg11[%c0_137, %c0_138] : memref<16x32xf32, #tpu.memory_space<vmem>>, vector<16x32xf32>
    %c0_139 = arith.constant 0 : index
    %c0_140 = arith.constant 0 : index
    %373 = vector.load %arg7[%c0_139, %c0_140] : memref<32x128xf32, #tpu.memory_space<vmem>>, vector<32x128xf32>
    %cst_141 = arith.constant dense<0.000000e+00> : vector<16x128xf32>
    %374 = tpu.matmul %372, %373, %cst_141 {dimension_numbers = #tpu.dot_dimension_numbers<[1], [0], [0], [1], [0, 0, 1, 1], [], []>} : vector<16x32xf32>, vector<32x128xf32>, vector<16x128xf32> -> vector<16x128xf32>
    %c0_142 = arith.constant 0 : index
    %c0_143 = arith.constant 0 : index
    %375 = vector.load %arg8[%c0_142, %c0_143] : memref<1x128xf32, #tpu.memory_space<vmem>>, vector<1x128xf32>
    %376 = vector.broadcast %375 : vector<1x128xf32> to vector<16x128xf32>
    %377 = arith.addf %374, %376 : vector<16x128xf32>
    %c0_144 = arith.constant 0 : index
    %c0_145 = arith.constant 0 : index
    %378 = vector.load %arg9[%c0_144, %c0_145] : memref<16x128xf32, #tpu.memory_space<vmem>>, vector<16x128xf32>
    tpu.vector_store %arg9[%c0_144, %c0_145], %377 {strides = array<i32>} : memref<16x128xf32, #tpu.memory_space<vmem>>, vector<16x128xf32>,
    return
  }
}

</mosaic_0001>

<llo_original>
// kernel: eou_vad_lstm_forward.1
$region0: #{eou_vad_lstm_forward.1}
  #allocation0 [shape = 'u32[]', space=smem, size = 0x4, offset = 0x4, fixed_abs, tag = 'smem constant byte address 0x4 - core index']
  #allocation1 [shape = 'u32[144,128]{1,0:T(1,128)}', space=vmem, size = 0x12000, scoped, tag = 'internal scratch']
  #allocation2 [shape = 'f32[16,128]{1,0:T(8,128)}', space=vmem, size = 0x2000, scoped, tag = 'scratch operand']
  #allocation3 [shape = 'f32[16,32]{1,0:T(8,128)}', space=vmem, size = 0x2000, scoped, tag = 'scratch operand']
  %s0 = inlined_call_operand.vmem [shape: f32[16,32], index: 0, kind: input, shape index: {}]
  %s1 = inlined_call_operand.vmem [shape: f32[32,128], index: 1, kind: input, shape index: {}]
  %s2 = inlined_call_operand.vmem [shape: f32[32,128], index: 2, kind: input, shape index: {}]
  %s3 = inlined_call_operand.vmem [shape: f32[1,128], index: 3, kind: input, shape index: {}]
  %s4 = inlined_call_operand.vmem [shape: f32[32,128], index: 4, kind: input, shape index: {}]
  %s5 = inlined_call_operand.vmem [shape: f32[32,128], index: 5, kind: input, shape index: {}]
  %s6 = inlined_call_operand.vmem [shape: f32[1,128], index: 6, kind: input, shape index: {}]
  %s7 = inlined_call_operand.vmem [shape: f32[32,128], index: 7, kind: input, shape index: {}]
  %s8 = inlined_call_operand.vmem [shape: f32[1,128], index: 8, kind: input, shape index: {}]
  %s9 = inlined_call_operand.vmem [shape: f32[16,128], index: 9, kind: output, shape index: {}]
  %s10 = sld [smem:[#allocation0]]
  $region46: #{eou_vad_lstm_forward.1} parent=0
    _
  %s12 = ssub.s32 1, %s10
  %s13 = scalar_select 0, %s12, %s10
  // Predicated region
  $region2: #{eou_vad_lstm_forward.1} parent=0 // pred_check
    _
  $region3: #{eou_vad_lstm_forward.1} parent=0 // pred_check_branch
    %15 = sbr.rel (0) target = $region5
  $region4: #{eou_vad_lstm_forward.1} parent=0 // pred_region
    _
  $region5: #{eou_vad_lstm_forward.1} parent=0 // pred_fallthru
    _
  // Predicated region
  $region6: #{eou_vad_lstm_forward.1} parent=0 // pred_check
    _
  $region7: #{eou_vad_lstm_forward.1} parent=0 // pred_check_branch
    %17 = sbr.rel (0) target = $region9
  $region8: #{eou_vad_lstm_forward.1} parent=0 // pred_region
    _
  $region9: #{eou_vad_lstm_forward.1} parent=0 // pred_fallthru
    _
  // Predicated region
  $region10: #{eou_vad_lstm_forward.1} parent=0 // pred_check
    _
  $region11: #{eou_vad_lstm_forward.1} parent=0 // pred_check_branch
    %19 = sbr.rel (0) target = $region13
  $region12: #{eou_vad_lstm_forward.1} parent=0 // pred_region
    _
  $region13: #{eou_vad_lstm_forward.1} parent=0 // pred_fallthru
    _
  // Predicated region
  $region14: #{eou_vad_lstm_forward.1} parent=0 // pred_check
    _
  $region15: #{eou_vad_lstm_forward.1} parent=0 // pred_check_branch
    %21 = sbr.rel (0) target = $region17
  $region16: #{eou_vad_lstm_forward.1} parent=0 // pred_region
    _
  $region17: #{eou_vad_lstm_forward.1} parent=0 // pred_fallthru
    _
  // Predicated region
  $region18: #{eou_vad_lstm_forward.1} parent=0 // pred_check
    _
  $region19: #{eou_vad_lstm_forward.1} parent=0 // pred_check_branch
    %23 = sbr.rel (0) target = $region21
  $region20: #{eou_vad_lstm_forward.1} parent=0 // pred_region
    _
  $region21: #{eou_vad_lstm_forward.1} parent=0 // pred_fallthru
    _
  // Predicated region
  $region22: #{eou_vad_lstm_forward.1} parent=0 // pred_check
    _
  $region23: #{eou_vad_lstm_forward.1} parent=0 // pred_check_branch
    %25 = sbr.rel (0) target = $region25
  $region24: #{eou_vad_lstm_forward.1} parent=0 // pred_region
    _
  $region25: #{eou_vad_lstm_forward.1} parent=0 // pred_fallthru
    _
  // Predicated region
  $region26: #{eou_vad_lstm_forward.1} parent=0 // pred_check
    _
  $region27: #{eou_vad_lstm_forward.1} parent=0 // pred_check_branch
    %27 = sbr.rel (0) target = $region29
  $region28: #{eou_vad_lstm_forward.1} parent=0 // pred_region
    _
  $region29: #{eou_vad_lstm_forward.1} parent=0 // pred_fallthru
    _
  // Predicated region
  $region30: #{eou_vad_lstm_forward.1} parent=0 // pred_check
    _
  $region31: #{eou_vad_lstm_forward.1} parent=0 // pred_check_branch
    %29 = sbr.rel (0) target = $region33
  $region32: #{eou_vad_lstm_forward.1} parent=0 // pred_region
    _
  $region33: #{eou_vad_lstm_forward.1} parent=0 // pred_fallthru
    _
  // Predicated region
  $region34: #{eou_vad_lstm_forward.1} parent=0 // pred_check
    _
  $region35: #{eou_vad_lstm_forward.1} parent=0 // pred_check_branch
    %31 = sbr.rel (0) target = $region37
  $region36: #{eou_vad_lstm_forward.1} parent=0 // pred_region
    _
  $region37: #{eou_vad_lstm_forward.1} parent=0 // pred_fallthru
    _
  %v32 = vld [vmem:[%s0] sm:$0xff]
  %v33 = vld [vmem:[%s0 + $0x8] sm:$0xff]
  %v34 = vld [vmem:[%s1] sm:$0xff]
  %v35 = vld [vmem:[%s1 + $0x8] sm:$0xff]
  %v36 = vld [vmem:[%s1 + $0x10] sm:$0xff]
  %v37 = vld [vmem:[%s1 + $0x18] sm:$0xff]
  %v38 = vld [vmem:[%s3] sm:$0x1]
  %v40 = vlaneseq
  %v41 = vshrl.u32 %v40, 7
  %v42 = vsub.s32 0, %v41
  %v43 = vrot.slane %v38, %v42
  %vm45 = vcmask 261120
  %v47 = vsel %vm45, %v32, 0
  %v50 = vsel %vm45, %v33, 0
  %52 = vmatprep.subr.mxu0 0.0
  %53 = vmatpush1.msra.mxu0 %v34
  %54 = vmatprep.subr.mxu0 0.0
  %55 = vmatpush1.msra.mxu0 %v35
  %56 = vmatprep.subr.mxu0 0.0
  %57 = vmatpush1.msra.mxu0 %v36
  %58 = vmatprep.subr.mxu0 0.0
  %59 = vmatpush1.msra.mxu0 %v37
  %60 = vmatprep.subr.mxu0 0.0
  %61 = vmatpush1.msra.mxu0 0.0
  %62 = vmatprep.subr.mxu0 0.0
  %63 = vmatpush1.msra.mxu0 0.0
  %64 = vmatprep.subr.mxu0 0.0
  %65 = vmatpush1.msra.mxu0 0.0
  %66 = vmatprep.subr.mxu0 0.0
  %67 = vmatpush1.msra.mxu0 0.0
  %68 = vmatprep.subr.mxu0 0.0
  %69 = vmatpush1.msra.mxu0 0.0
  %70 = vmatprep.subr.mxu0 0.0
  %71 = vmatpush1.msra.mxu0 0.0
  %72 = vmatprep.subr.mxu0 0.0
  %73 = vmatpush1.msra.mxu0 0.0
  %74 = vmatprep.subr.mxu0 0.0
  %75 = vmatpush1.msra.mxu0 0.0
  %76 = vmatprep.subr.mxu0 0.0
  %77 = vmatpush1.msra.mxu0 0.0
  %78 = vmatprep.subr.mxu0 0.0
  %79 = vmatpush1.msra.mxu0 0.0
  %80 = vmatprep.subr.mxu0 0.0
  %81 = vmatpush1.msra.mxu0 0.0
  %82 = vmatprep.subr.mxu0 0.0
  %83 = vmatpush1.msra.mxu0 0.0
  %84 = vmatprep.subr.mxu0 0.0
  %85 = vmatpush1.msra.mxu0 0.0
  %86 = vmatprep.subr.mxu0 0.0
  %87 = vmatpush1.msra.mxu0 0.0
  %88 = vmatprep.subr.mxu0 0.0
  %89 = vmatpush1.msra.mxu0 0.0
  %90 = vmatprep.subr.mxu0 0.0
  %91 = vmatpush1.msra.mxu0 0.0
  %92 = vmatprep.subr.mxu0 0.0
  %93 = vmatpush1.msra.mxu0 0.0
  %94 = vmatprep.subr.mxu0 0.0
  %95 = vmatpush1.msra.mxu0 0.0
  %96 = vmatprep.subr.mxu0 0.0
  %97 = vmatpush1.msra.mxu0 0.0
  %98 = vmatprep.subr.mxu0 0.0
  %99 = vmatpush1.msra.mxu0 0.0
  %100 = vmatprep.subr.mxu0 0.0
  %101 = vmatpush1.msra.mxu0 0.0
  %102 = vmatprep.subr.mxu0 0.0
  %103 = vmatpush1.msra.mxu0 0.0
  %104 = vmatprep.subr.mxu0 0.0
  %105 = vmatpush1.msra.mxu0 0.0
  %106 = vmatprep.subr.mxu0 0.0
  %107 = vmatpush1.msra.mxu0 0.0
  %108 = vmatprep.subr.mxu0 0.0
  %109 = vmatpush1.msra.mxu0 0.0
  %110 = vmatprep.subr.mxu0 0.0
  %111 = vmatpush1.msra.mxu0 0.0
  %112 = vmatprep.subr.mxu0 0.0
  %113 = vmatpush1.msra.mxu0 0.0
  %114 = vmatprep.subr.mxu0 0.0
  %115 = vmatpush1.msra.mxu0 0.0
  %116 = vmatprep.mubr.f32.mxu0 0.0
  %117 = vmatmul.mubr.f32.gmra.mrb[0].mxu0 %v47
  %v118 = vpop.f32.mrb[0].mxu0
  %v119 = vadd.f32 %v43, %v118
  %v120 = vpop.f32.mrb[0].mxu0
  %121 = vmatprep.mubr.f32.mxu0 0.0
  %122 = vmatmul.mubr.f32.gmra.mrb[0].mxu0 %v50
  %v123 = vpop.f32.mrb[0].mxu0
  %v124 = vadd.f32 %v43, %v123
  %v125 = vpop.f32.mrb[0].mxu0
  %126 = vdwg.mxu0
  %127 = vst [vmem:[#allocation2] sm:$0xff] %v119
  %128 = vst [vmem:[#allocation2 + $0x8] sm:$0xff] %v124
  %v129 = vld [vmem:[%s2] sm:$0xff]
  %v130 = vld [vmem:[%s2 + $0x8] sm:$0xff]
  %v131 = vld [vmem:[%s2 + $0x10] sm:$0xff]
  %v132 = vld [vmem:[%s2 + $0x18] sm:$0xff]
  %v133 = vld [vmem:[#allocation2] ss:$8 sm:$0x3]
  %v135 = vsel %vm45, 0.0, 0
  %137 = vmatprep.subr.mxu0 0.0
  %138 = vmatpush1.msra.mxu0 %v129
  %139 = vmatprep.subr.mxu0 0.0
  %140 = vmatpush1.msra.mxu0 %v130
  %141 = vmatprep.subr.mxu0 0.0
  %142 = vmatpush1.msra.mxu0 %v131
  %143 = vmatprep.subr.mxu0 0.0
  %144 = vmatpush1.msra.mxu0 %v132
  %145 = vmatprep.subr.mxu0 0.0
  %146 = vmatpush1.msra.mxu0 0.0
  %147 = vmatprep.subr.mxu0 0.0
  %148 = vmatpush1.msra.mxu0 0.0
  %149 = vmatprep.subr.mxu0 0.0
  %150 = vmatpush1.msra.mxu0 0.0
  %151 = vmatprep.subr.mxu0 0.0
  %152 = vmatpush1.msra.mxu0 0.0
  %153 = vmatprep.subr.mxu0 0.0
  %154 = vmatpush1.msra.mxu0 0.0
  %155 = vmatprep.subr.mxu0 0.0
  %156 = vmatpush1.msra.mxu0 0.0
  %157 = vmatprep.subr.mxu0 0.0
  %158 = vmatpush1.msra.mxu0 0.0
  %159 = vmatprep.subr.mxu0 0.0
  %160 = vmatpush1.msra.mxu0 0.0
  %161 = vmatprep.subr.mxu0 0.0
  %162 = vmatpush1.msra.mxu0 0.0
  %163 = vmatprep.subr.mxu0 0.0
  %164 = vmatpush1.msra.mxu0 0.0
  %165 = vmatprep.subr.mxu0 0.0
  %166 = vmatpush1.msra.mxu0 0.0
  %167 = vmatprep.subr.mxu0 0.0
  %168 = vmatpush1.msra.mxu0 0.0
  %169 = vmatprep.subr.mxu0 0.0
  %170 = vmatpush1.msra.mxu0 0.0
  %171 = vmatprep.subr.mxu0 0.0
  %172 = vmatpush1.msra.mxu0 0.0
  %173 = vmatprep.subr.mxu0 0.0
  %174 = vmatpush1.msra.mxu0 0.0
  %175 = vmatprep.subr.mxu0 0.0
  %176 = vmatpush1.msra.mxu0 0.0
  %177 = vmatprep.subr.mxu0 0.0
  %178 = vmatpush1.msra.mxu0 0.0
  %179 = vmatprep.subr.mxu0 0.0
  %180 = vmatpush1.msra.mxu0 0.0
  %181 = vmatprep.subr.mxu0 0.0
  %182 = vmatpush1.msra.mxu0 0.0
  %183 = vmatprep.subr.mxu0 0.0
  %184 = vmatpush1.msra.mxu0 0.0
  %185 = vmatprep.subr.mxu0 0.0
  %186 = vmatpush1.msra.mxu0 0.0
  %187 = vmatprep.subr.mxu0 0.0
  %188 = vmatpush1.msra.mxu0 0.0
  %189 = vmatprep.subr.mxu0 0.0
  %190 = vmatpush1.msra.mxu0 0.0
  %191 = vmatprep.subr.mxu0 0.0
  %192 = vmatpush1.msra.mxu0 0.0
  %193 = vmatprep.subr.mxu0 0.0
  %194 = vmatpush1.msra.mxu0 0.0
  %195 = vmatprep.subr.mxu0 0.0
  %196 = vmatpush1.msra.mxu0 0.0
  %197 = vmatprep.subr.mxu0 0.0
  %198 = vmatpush1.msra.mxu0 0.0
  %199 = vmatprep.subr.mxu0 0.0
  %200 = vmatpush1.msra.mxu0 0.0
  %201 = vmatprep.mubr.f32.mxu0 0.0
  %202 = vmatmul.mubr.f32.gmra.mrb[0].mxu0 %v135
  %v203 = vpop.f32.mrb[0].mxu0
  %v204 = vadd.f32 0.0, %v203
  %v205 = vpop.f32.mrb[0].mxu0
  %206 = vdwg.mxu0
  %v207 = vadd.f32 %v133, %v204
  %v208 = vxor.u32 %v207, 2147483648
  %v209 = vmul.f32 %v208, 1.442695
  %v210 = vpow.pop %v209
  %v211 = vadd.f32 %v210, 1.0
  %v212 = vrcp.pop %v211
  %v213 = vmul.f32 1.0, %v212
  %v214 = vtanh.pop %v207
  %v215 = vmul.f32 %v213, 0.0
  %217 = vrot.lane.b32.xlu0 %v214, 64
  %v218 = vpop.permute.xlu0 %217
  %v220 = vmul.f32 %v213, %v218
  %222 = vrot.lane.b32.xlu0 %v220, 32
  %v223 = vpop.permute.xlu0 %222
  %v225 = vadd.f32 %v215, %v223
  %v226 = vtanh.pop %v225
  %228 = vrot.lane.b32.xlu0 %v226, 64
  %v229 = vpop.permute.xlu0 %228
  %v231 = vmul.f32 %v213, %v229
  %233 = vrot.lane.b32.xlu0 %v231, 32
  %v234 = vpop.permute.xlu0 %233
  %vm236 = vcmask 253952
  %237 = vst.msk [vmem:[#allocation3] sm:$0x1] %vm236, %v234
  %vm238 = vcmask 254977
  %239 = vst.msk [vmem:[#allocation3 + $0x7] sm:$0x2] %vm238, %v234
  %s240 = scalar_lea.vmem [#allocation2], 1
  %v241 = vld [vmem:[%s240] ss:$8 sm:$0x3]
  %v242 = vsel %vm45, %v234, 0
  %244 = vmatprep.subr.mxu0 0.0
  %245 = vmatpush1.msra.mxu0 %v129
  %246 = vmatprep.subr.mxu0 0.0
  %247 = vmatpush1.msra.mxu0 %v130
  %248 = vmatprep.subr.mxu0 0.0
  %249 = vmatpush1.msra.mxu0 %v131
  %250 = vmatprep.subr.mxu0 0.0
  %251 = vmatpush1.msra.mxu0 %v132
  %252 = vmatprep.subr.mxu0 0.0
  %253 = vmatpush1.msra.mxu0 0.0
  %254 = vmatprep.subr.mxu0 0.0
  %255 = vmatpush1.msra.mxu0 0.0
  %256 = vmatprep.subr.mxu0 0.0
  %257 = vmatpush1.msra.mxu0 0.0
  %258 = vmatprep.subr.mxu0 0.0
  %259 = vmatpush1.msra.mxu0 0.0
  %260 = vmatprep.subr.mxu0 0.0
  %261 = vmatpush1.msra.mxu0 0.0
  %262 = vmatprep.subr.mxu0 0.0
  %263 = vmatpush1.msra.mxu0 0.0
  %264 = vmatprep.subr.mxu0 0.0
  %265 = vmatpush1.msra.mxu0 0.0
  %266 = vmatprep.subr.mxu0 0.0
  %267 = vmatpush1.msra.mxu0 0.0
  %268 = vmatprep.subr.mxu0 0.0
  %269 = vmatpush1.msra.mxu0 0.0
  %270 = vmatprep.subr.mxu0 0.0
  %271 = vmatpush1.msra.mxu0 0.0
  %272 = vmatprep.subr.mxu0 0.0
  %273 = vmatpush1.msra.mxu0 0.0
  %274 = vmatprep.subr.mxu0 0.0
  %275 = vmatpush1.msra.mxu0 0.0
  %276 = vmatprep.subr.mxu0 0.0
  %277 = vmatpush1.msra.mxu0 0.0
  %278 = vmatprep.subr.mxu0 0.0
  %279 = vmatpush1.msra.mxu0 0.0
  %280 = vmatprep.subr.mxu0 0.0
  %281 = vmatpush1.msra.mxu0 0.0
  %282 = vmatprep.subr.mxu0 0.0
  %283 = vmatpush1.msra.mxu0 0.0
  %284 = vmatprep.subr.mxu0 0.0
  %285 = vmatpush1.msra.mxu0 0.0
  %286 = vmatprep.subr.mxu0 0.0
  %287 = vmatpush1.msra.mxu0 0.0
  %288 = vmatprep.subr.mxu0 0.0
  %289 = vmatpush1.msra.mxu0 0.0
  %290 = vmatprep.subr.mxu0 0.0
  %291 = vmatpush1.msra.mxu0 0.0
  %292 = vmatprep.subr.mxu0 0.0
  %293 = vmatpush1.msra.mxu0 0.0
  %294 = vmatprep.subr.mxu0 0.0
  %295 = vmatpush1.msra.mxu0 0.0
  %296 = vmatprep.subr.mxu0 0.0
  %297 = vmatpush1.msra.mxu0 0.0
  %298 = vmatprep.subr.mxu0 0.0
  %299 = vmatpush1.msra.mxu0 0.0
  %300 = vmatprep.subr.mxu0 0.0
  %301 = vmatpush1.msra.mxu0 0.0
  %302 = vmatprep.subr.mxu0 0.0
  %303 = vmatpush1.msra.mxu0 0.0
  %304 = vmatprep.subr.mxu0 0.0
  %305 = vmatpush1.msra.mxu0 0.0
  %306 = vmatprep.subr.mxu0 0.0
  %307 = vmatpush1.msra.mxu0 0.0
  %308 = vmatprep.mubr.f32.mxu0 0.0
  %309 = vmatmul.mubr.f32.gmra.mrb[0].mxu0 %v242
  %v310 = vpop.f32.mrb[0].mxu0
  %v311 = vadd.f32 0.0, %v310
  %v312 = vpop.f32.mrb[0].mxu0
  %313 = vdwg.mxu0
  %v314 = vadd.f32 %v241, %v311
  %v315 = vxor.u32 %v314, 2147483648
  %v316 = vmul.f32 %v315, 1.442695
  %v317 = vpow.pop %v316
  %v318 = vadd.f32 %v317, 1.0
  %v319 = vrcp.pop %v318
  %v320 = vmul.f32 1.0, %v319
  %v321 = vtanh.pop %v314
  %v322 = vmul.f32 %v320, %v225
  %324 = vrot.lane.b32.xlu0 %v321, 64
  %v325 = vpop.permute.xlu0 %324
  %v327 = vmul.f32 %v320, %v325
  %329 = vrot.lane.b32.xlu0 %v327, 32
  %v330 = vpop.permute.xlu0 %329
  %v332 = vadd.f32 %v322, %v330
  %v333 = vtanh.pop %v332
  %335 = vrot.lane.b32.xlu0 %v333, 64
  %v336 = vpop.permute.xlu0 %335
  %v338 = vmul.f32 %v320, %v336
  %340 = vrot.lane.b32.xlu0 %v338, 32
  %v341 = vpop.permute.xlu0 %340
  %343 = vst.msk [vmem:[#allocation3 + $0x1] sm:$0x1] %vm236, %v341
  %344 = vst.msk [vmem:[#allocation3 + $0x8] sm:$0x2] %vm238, %v341
  %s345 = scalar_lea.vmem [#allocation2], 2
  %v346 = vld [vmem:[%s345] ss:$8 sm:$0x3]
  %v347 = vsel %vm45, %v341, 0
  %349 = vmatprep.subr.mxu0 0.0
  %350 = vmatpush1.msra.mxu0 %v129
  %351 = vmatprep.subr.mxu0 0.0
  %352 = vmatpush1.msra.mxu0 %v130
  %353 = vmatprep.subr.mxu0 0.0
  %354 = vmatpush1.msra.mxu0 %v131
  %355 = vmatprep.subr.mxu0 0.0
  %356 = vmatpush1.msra.mxu0 %v132
  %357 = vmatprep.subr.mxu0 0.0
  %358 = vmatpush1.msra.mxu0 0.0
  %359 = vmatprep.subr.mxu0 0.0
  %360 = vmatpush1.msra.mxu0 0.0
  %361 = vmatprep.subr.mxu0 0.0
  %362 = vmatpush1.msra.mxu0 0.0
  %363 = vmatprep.subr.mxu0 0.0
  %364 = vmatpush1.msra.mxu0 0.0
  %365 = vmatprep.subr.mxu0 0.0
  %366 = vmatpush1.msra.mxu0 0.0
  %367 = vmatprep.subr.mxu0 0.0
  %368 = vmatpush1.msra.mxu0 0.0
  %369 = vmatprep.subr.mxu0 0.0
  %370 = vmatpush1.msra.mxu0 0.0
  %371 = vmatprep.subr.mxu0 0.0
  %372 = vmatpush1.msra.mxu0 0.0
  %373 = vmatprep.subr.mxu0 0.0
  %374 = vmatpush1.msra.mxu0 0.0
  %375 = vmatprep.subr.mxu0 0.0
  %376 = vmatpush1.msra.mxu0 0.0
  %377 = vmatprep.subr.mxu0 0.0
  %378 = vmatpush1.msra.mxu0 0.0
  %379 = vmatprep.subr.mxu0 0.0
  %380 = vmatpush1.msra.mxu0 0.0
  %381 = vmatprep.subr.mxu0 0.0
  %382 = vmatpush1.msra.mxu0 0.0
  %383 = vmatprep.subr.mxu0 0.0
  %384 = vmatpush1.msra.mxu0 0.0
  %385 = vmatprep.subr.mxu0 0.0
  %386 = vmatpush1.msra.mxu0 0.0
  %387 = vmatprep.subr.mxu0 0.0
  %388 = vmatpush1.msra.mxu0 0.0
  %389 = vmatprep.subr.mxu0 0.0
  %390 = vmatpush1.msra.mxu0 0.0
  %391 = vmatprep.subr.mxu0 0.0
  %392 = vmatpush1.msra.mxu0 0.0
  %393 = vmatprep.subr.mxu0 0.0
  %394 = vmatpush1.msra.mxu0 0.0
  %395 = vmatprep.subr.mxu0 0.0
  %396 = vmatpush1.msra.mxu0 0.0
  %397 = vmatprep.subr.mxu0 0.0
  %398 = vmatpush1.msra.mxu0 0.0
  %399 = vmatprep.subr.mxu0 0.0
  %400 = vmatpush1.msra.mxu0 0.0
  %401 = vmatprep.subr.mxu0 0.0
  %402 = vmatpush1.msra.mxu0 0.0
  %403 = vmatprep.subr.mxu0 0.0
  %404 = vmatpush1.msra.mxu0 0.0
  %405 = vmatprep.subr.mxu0 0.0
  %406 = vmatpush1.msra.mxu0 0.0
  %407 = vmatprep.subr.mxu0 0.0
  %408 = vmatpush1.msra.mxu0 0.0
  %409 = vmatprep.subr.mxu0 0.0
  %410 = vmatpush1.msra.mxu0 0.0
  %411 = vmatprep.subr.mxu0 0.0
  %412 = vmatpush1.msra.mxu0 0.0
  %413 = vmatprep.mubr.f32.mxu0 0.0
  %414 = vmatmul.mubr.f32.gmra.mrb[0].mxu0 %v347
  %v415 = vpop.f32.mrb[0].mxu0
  %v416 = vadd.f32 0.0, %v415
  %v417 = vpop.f32.mrb[0].mxu0
  %418 = vdwg.mxu0
  %v419 = vadd.f32 %v346, %v416
  %v420 = vxor.u32 %v419, 2147483648
  %v421 = vmul.f32 %v420, 1.442695
  %v422 = vpow.pop %v421
  %v423 = vadd.f32 %v422, 1.0
  %v424 = vrcp.pop %v423
  %v425 = vmul.f32 1.0, %v424
  %v426 = vtanh.pop %v419
  %v427 = vmul.f32 %v425, %v332
  %429 = vrot.lane.b32.xlu0 %v426, 64
  %v430 = vpop.permute.xlu0 %429
  %v432 = vmul.f32 %v425, %v430
  %434 = vrot.lane.b32.xlu0 %v432, 32
  %v435 = vpop.permute.xlu0 %434
  %v437 = vadd.f32 %v427, %v435
  %v438 = vtanh.pop %v437
  %440 = vrot.lane.b32.xlu0 %v438, 64
  %v441 = vpop.permute.xlu0 %440
  %v443 = vmul.f32 %v425, %v441
  %445 = vrot.lane.b32.xlu0 %v443, 32
  %v446 = vpop.permute.xlu0 %445
  %448 = vst.msk [vmem:[#allocation3 + $0x2] sm:$0x1] %vm236, %v446
  %449 = vst.msk [vmem:[#allocation3 + $0x9] sm:$0x2] %vm238, %v446
  %s450 = scalar_lea.vmem [#allocation2], 3
  %v451 = vld [vmem:[%s450] ss:$8 sm:$0x3]
  %v452 = vsel %vm45, %v446, 0
  %454 = vmatprep.subr.mxu0 0.0
  %455 = vmatpush1.msra.mxu0 %v129
  %456 = vmatprep.subr.mxu0 0.0
  %457 = vmatpush1.msra.mxu0 %v130
  %458 = vmatprep.subr.mxu0 0.0
  %459 = vmatpush1.msra.mxu0 %v131
  %460 = vmatprep.subr.mxu0 0.0
  %461 = vmatpush1.msra.mxu0 %v132
  %462 = vmatprep.subr.mxu0 0.0
  %463 = vmatpush1.msra.mxu0 0.0
  %464 = vmatprep.subr.mxu0 0.0
  %465 = vmatpush1.msra.mxu0 0.0
  %466 = vmatprep.subr.mxu0 0.0
  %467 = vmatpush1.msra.mxu0 0.0
  %468 = vmatprep.subr.mxu0 0.0
  %469 = vmatpush1.msra.mxu0 0.0
  %470 = vmatprep.subr.mxu0 0.0
  %471 = vmatpush1.msra.mxu0 0.0
  %472 = vmatprep.subr.mxu0 0.0
  %473 = vmatpush1.msra.mxu0 0.0
  %474 = vmatprep.subr.mxu0 0.0
  %475 = vmatpush1.msra.mxu0 0.0
  %476 = vmatprep.subr.mxu0 0.0
  %477 = vmatpush1.msra.mxu0 0.0
  %478 = vmatprep.subr.mxu0 0.0
  %479 = vmatpush1.msra.mxu0 0.0
  %480 = vmatprep.subr.mxu0 0.0
  %481 = vmatpush1.msra.mxu0 0.0
  %482 = vmatprep.subr.mxu0 0.0
  %483 = vmatpush1.msra.mxu0 0.0
  %484 = vmatprep.subr.mxu0 0.0
  %485 = vmatpush1.msra.mxu0 0.0
  %486 = vmatprep.subr.mxu0 0.0
  %487 = vmatpush1.msra.mxu0 0.0
  %488 = vmatprep.subr.mxu0 0.0
  %489 = vmatpush1.msra.mxu0 0.0
  %490 = vmatprep.subr.mxu0 0.0
  %491 = vmatpush1.msra.mxu0 0.0
  %492 = vmatprep.subr.mxu0 0.0
  %493 = vmatpush1.msra.mxu0 0.0
  %494 = vmatprep.subr.mxu0 0.0
  %495 = vmatpush1.msra.mxu0 0.0
  %496 = vmatprep.subr.mxu0 0.0
  %497 = vmatpush1.msra.mxu0 0.0
  %498 = vmatprep.subr.mxu0 0.0
  %499 = vmatpush1.msra.mxu0 0.0
  %500 = vmatprep.subr.mxu0 0.0
  %501 = vmatpush1.msra.mxu0 0.0
  %502 = vmatprep.subr.mxu0 0.0
  %503 = vmatpush1.msra.mxu0 0.0
  %504 = vmatprep.subr.mxu0 0.0
  %505 = vmatpush1.msra.mxu0 0.0
  %506 = vmatprep.subr.mxu0 0.0
  %507 = vmatpush1.msra.mxu0 0.0
  %508 = vmatprep.subr.mxu0 0.0
  %509 = vmatpush1.msra.mxu0 0.0
  %510 = vmatprep.subr.mxu0 0.0
  %511 = vmatpush1.msra.mxu0 0.0
  %512 = vmatprep.subr.mxu0 0.0
  %513 = vmatpush1.msra.mxu0 0.0
  %514 = vmatprep.subr.mxu0 0.0
  %515 = vmatpush1.msra.mxu0 0.0
  %516 = vmatprep.subr.mxu0 0.0
  %517 = vmatpush1.msra.mxu0 0.0
  %518 = vmatprep.mubr.f32.mxu0 0.0
  %519 = vmatmul.mubr.f32.gmra.mrb[0].mxu0 %v452
  %v520 = vpop.f32.mrb[0].mxu0
  %v521 = vadd.f32 0.0, %v520
  %v522 = vpop.f32.mrb[0].mxu0
  %523 = vdwg.mxu0
  %v524 = vadd.f32 %v451, %v521
  %v525 = vxor.u32 %v524, 2147483648
  %v526 = vmul.f32 %v525, 1.442695
  %v527 = vpow.pop %v526
  %v528 = vadd.f32 %v527, 1.0
  %v529 = vrcp.pop %v528
  %v530 = vmul.f32 1.0, %v529
  %v531 = vtanh.pop %v524
  %v532 = vmul.f32 %v530, %v437
  %534 = vrot.lane.b32.xlu0 %v531, 64
  %v535 = vpop.permute.xlu0 %534
  %v537 = vmul.f32 %v530, %v535
  %539 = vrot.lane.b32.xlu0 %v537, 32
  %v540 = vpop.permute.xlu0 %539
  %v542 = vadd.f32 %v532, %v540
  %v543 = vtanh.pop %v542
  %545 = vrot.lane.b32.xlu0 %v543, 64
  %v546 = vpop.permute.xlu0 %545
  %v548 = vmul.f32 %v530, %v546
  %550 = vrot.lane.b32.xlu0 %v548, 32
  %v551 = vpop.permute.xlu0 %550
  %553 = vst.msk [vmem:[#allocation3 + $0x3] sm:$0x1] %vm236, %v551
  %554 = vst.msk [vmem:[#allocation3 + $0xa] sm:$0x2] %vm238, %v551
  %s555 = scalar_lea.vmem [#allocation2], 4
  %v556 = vld [vmem:[%s555] ss:$8 sm:$0x3]
  %v557 = vsel %vm45, %v551, 0
  %559 = vmatprep.subr.mxu0 0.0
  %560 = vmatpush1.msra.mxu0 %v129
  %561 = vmatprep.subr.mxu0 0.0
  %562 = vmatpush1.msra.mxu0 %v130
  %563 = vmatprep.subr.mxu0 0.0
  %564 = vmatpush1.msra.mxu0 %v131
  %565 = vmatprep.subr.mxu0 0.0
  %566 = vmatpush1.msra.mxu0 %v132
  %567 = vmatprep.subr.mxu0 0.0
  %568 = vmatpush1.msra.mxu0 0.0
  %569 = vmatprep.subr.mxu0 0.0
  %570 = vmatpush1.msra.mxu0 0.0
  %571 = vmatprep.subr.mxu0 0.0
  %572 = vmatpush1.msra.mxu0 0.0
  %573 = vmatprep.subr.mxu0 0.0
  %574 = vmatpush1.msra.mxu0 0.0
  %575 = vmatprep.subr.mxu0 0.0
  %576 = vmatpush1.msra.mxu0 0.0
  %577 = vmatprep.subr.mxu0 0.0
  %578 = vmatpush1.msra.mxu0 0.0
  %579 = vmatprep.subr.mxu0 0.0
  %580 = vmatpush1.msra.mxu0 0.0
  %581 = vmatprep.subr.mxu0 0.0
  %582 = vmatpush1.msra.mxu0 0.0
  %583 = vmatprep.subr.mxu0 0.0
  %584 = vmatpush1.msra.mxu0 0.0
  %585 = vmatprep.subr.mxu0 0.0
  %586 = vmatpush1.msra.mxu0 0.0
  %587 = vmatprep.subr.mxu0 0.0
  %588 = vmatpush1.msra.mxu0 0.0
  %589 = vmatprep.subr.mxu0 0.0
  %590 = vmatpush1.msra.mxu0 0.0
  %591 = vmatprep.subr.mxu0 0.0
  %592 = vmatpush1.msra.mxu0 0.0
  %593 = vmatprep.subr.mxu0 0.0
  %594 = vmatpush1.msra.mxu0 0.0
  %595 = vmatprep.subr.mxu0 0.0
  %596 = vmatpush1.msra.mxu0 0.0
  %597 = vmatprep.subr.mxu0 0.0
  %598 = vmatpush1.msra.mxu0 0.0
  %599 = vmatprep.subr.mxu0 0.0
  %600 = vmatpush1.msra.mxu0 0.0
  %601 = vmatprep.subr.mxu0 0.0
  %602 = vmatpush1.msra.mxu0 0.0
  %603 = vmatprep.subr.mxu0 0.0
  %604 = vmatpush1.msra.mxu0 0.0
  %605 = vmatprep.subr.mxu0 0.0
  %606 = vmatpush1.msra.mxu0 0.0
  %607 = vmatprep.subr.mxu0 0.0
  %608 = vmatpush1.msra.mxu0 0.0
  %609 = vmatprep.subr.mxu0 0.0
  %610 = vmatpush1.msra.mxu0 0.0
  %611 = vmatprep.subr.mxu0 0.0
  %612 = vmatpush1.msra.mxu0 0.0
  %613 = vmatprep.subr.mxu0 0.0
  %614 = vmatpush1.msra.mxu0 0.0
  %615 = vmatprep.subr.mxu0 0.0
  %616 = vmatpush1.msra.mxu0 0.0
  %617 = vmatprep.subr.mxu0 0.0
  %618 = vmatpush1.msra.mxu0 0.0
  %619 = vmatprep.subr.mxu0 0.0
  %620 = vmatpush1.msra.mxu0 0.0
  %621 = vmatprep.subr.mxu0 0.0
  %622 = vmatpush1.msra.mxu0 0.0
  %623 = vmatprep.mubr.f32.mxu0 0.0
  %624 = vmatmul.mubr.f32.gmra.mrb[0].mxu0 %v557
  %v625 = vpop.f32.mrb[0].mxu0
  %v626 = vadd.f32 0.0, %v625
  %v627 = vpop.f32.mrb[0].mxu0
  %628 = vdwg.mxu0
  %v629 = vadd.f32 %v556, %v626
  %v630 = vxor.u32 %v629, 2147483648
  %v631 = vmul.f32 %v630, 1.442695
  %v632 = vpow.pop %v631
  %v633 = vadd.f32 %v632, 1.0
  %v634 = vrcp.pop %v633
  %v635 = vmul.f32 1.0, %v634
  %v636 = vtanh.pop %v629
  %v637 = vmul.f32 %v635, %v542
  %639 = vrot.lane.b32.xlu0 %v636, 64
  %v640 = vpop.permute.xlu0 %639
  %v642 = vmul.f32 %v635, %v640
  %644 = vrot.lane.b32.xlu0 %v642, 32
  %v645 = vpop.permute.xlu0 %644
  %v647 = vadd.f32 %v637, %v645
  %v648 = vtanh.pop %v647
  %650 = vrot.lane.b32.xlu0 %v648, 64
  %v651 = vpop.permute.xlu0 %650
  %v653 = vmul.f32 %v635, %v651
  %655 = vrot.lane.b32.xlu0 %v653, 32
  %v656 = vpop.permute.xlu0 %655
  %658 = vst.msk [vmem:[#allocation3 + $0x4] sm:$0x1] %vm236, %v656
  %659 = vst.msk [vmem:[#allocation3 + $0xb] sm:$0x2] %vm238, %v656
  %s660 = scalar_lea.vmem [#allocation2], 5
  %v661 = vld [vmem:[%s660] ss:$8 sm:$0x3]
  %v662 = vsel %vm45, %v656, 0
  %664 = vmatprep.subr.mxu0 0.0
  %665 = vmatpush1.msra.mxu0 %v129
  %666 = vmatprep.subr.mxu0 0.0
  %667 = vmatpush1.msra.mxu0 %v130
  %668 = vmatprep.subr.mxu0 0.0
  %669 = vmatpush1.msra.mxu0 %v131
  %670 = vmatprep.subr.mxu0 0.0
  %671 = vmatpush1.msra.mxu0 %v132
  %672 = vmatprep.subr.mxu0 0.0
  %673 = vmatpush1.msra.mxu0 0.0
  %674 = vmatprep.subr.mxu0 0.0
  %675 = vmatpush1.msra.mxu0 0.0
  %676 = vmatprep.subr.mxu0 0.0
  %677 = vmatpush1.msra.mxu0 0.0
  %678 = vmatprep.subr.mxu0 0.0
  %679 = vmatpush1.msra.mxu0 0.0
  %680 = vmatprep.subr.mxu0 0.0
  %681 = vmatpush1.msra.mxu0 0.0
  %682 = vmatprep.subr.mxu0 0.0
  %683 = vmatpush1.msra.mxu0 0.0
  %684 = vmatprep.subr.mxu0 0.0
  %685 = vmatpush1.msra.mxu0 0.0
  %686 = vmatprep.subr.mxu0 0.0
  %687 = vmatpush1.msra.mxu0 0.0
  %688 = vmatprep.subr.mxu0 0.0
  %689 = vmatpush1.msra.mxu0 0.0
  %690 = vmatprep.subr.mxu0 0.0
  %691 = vmatpush1.msra.mxu0 0.0
  %692 = vmatprep.subr.mxu0 0.0
  %693 = vmatpush1.msra.mxu0 0.0
  %694 = vmatprep.subr.mxu0 0.0
  %695 = vmatpush1.msra.mxu0 0.0
  %696 = vmatprep.subr.mxu0 0.0
  %697 = vmatpush1.msra.mxu0 0.0
  %698 = vmatprep.subr.mxu0 0.0
  %699 = vmatpush1.msra.mxu0 0.0
  %700 = vmatprep.subr.mxu0 0.0
  %701 = vmatpush1.msra.mxu0 0.0
  %702 = vmatprep.subr.mxu0 0.0
  %703 = vmatpush1.msra.mxu0 0.0
  %704 = vmatprep.subr.mxu0 0.0
  %705 = vmatpush1.msra.mxu0 0.0
  %706 = vmatprep.subr.mxu0 0.0
  %707 = vmatpush1.msra.mxu0 0.0
  %708 = vmatprep.subr.mxu0 0.0
  %709 = vmatpush1.msra.mxu0 0.0
  %710 = vmatprep.subr.mxu0 0.0
  %711 = vmatpush1.msra.mxu0 0.0
  %712 = vmatprep.subr.mxu0 0.0
  %713 = vmatpush1.msra.mxu0 0.0
  %714 = vmatprep.subr.mxu0 0.0
  %715 = vmatpush1.msra.mxu0 0.0
  %716 = vmatprep.subr.mxu0 0.0
  %717 = vmatpush1.msra.mxu0 0.0
  %718 = vmatprep.subr.mxu0 0.0
  %719 = vmatpush1.msra.mxu0 0.0
  %720 = vmatprep.subr.mxu0 0.0
  %721 = vmatpush1.msra.mxu0 0.0
  %722 = vmatprep.subr.mxu0 0.0
  %723 = vmatpush1.msra.mxu0 0.0
  %724 = vmatprep.subr.mxu0 0.0
  %725 = vmatpush1.msra.mxu0 0.0
  %726 = vmatprep.subr.mxu0 0.0
  %727 = vmatpush1.msra.mxu0 0.0
  %728 = vmatprep.mubr.f32.mxu0 0.0
  %729 = vmatmul.mubr.f32.gmra.mrb[0].mxu0 %v662
  %v730 = vpop.f32.mrb[0].mxu0
  %v731 = vadd.f32 0.0, %v730
  %v732 = vpop.f32.mrb[0].mxu0
  %733 = vdwg.mxu0
  %v734 = vadd.f32 %v661, %v731
  %v735 = vxor.u32 %v734, 2147483648
  %v736 = vmul.f32 %v735, 1.442695
  %v737 = vpow.pop %v736
  %v738 = vadd.f32 %v737, 1.0
  %v739 = vrcp.pop %v738
  %v740 = vmul.f32 1.0, %v739
  %v741 = vtanh.pop %v734
  %v742 = vmul.f32 %v740, %v647
  %744 = vrot.lane.b32.xlu0 %v741, 64
  %v745 = vpop.permute.xlu0 %744
  %v747 = vmul.f32 %v740, %v745
  %749 = vrot.lane.b32.xlu0 %v747, 32
  %v750 = vpop.permute.xlu0 %749
  %v752 = vadd.f32 %v742, %v750
  %v753 = vtanh.pop %v752
  %755 = vrot.lane.b32.xlu0 %v753, 64
  %v756 = vpop.permute.xlu0 %755
  %v758 = vmul.f32 %v740, %v756
  %760 = vrot.lane.b32.xlu0 %v758, 32
  %v761 = vpop.permute.xlu0 %760
  %763 = vst.msk [vmem:[#allocation3 + $0x5] sm:$0x1] %vm236, %v761
  %764 = vst.msk [vmem:[#allocation3 + $0xc] sm:$0x2] %vm238, %v761
  %s765 = scalar_lea.vmem [#allocation2], 6
  %v766 = vld [vmem:[%s765] ss:$8 sm:$0x3]
  %v767 = vsel %vm45, %v761, 0
  %769 = vmatprep.subr.mxu0 0.0
  %770 = vmatpush1.msra.mxu0 %v129
  %771 = vmatprep.subr.mxu0 0.0
  %772 = vmatpush1.msra.mxu0 %v130
  %773 = vmatprep.subr.mxu0 0.0
  %774 = vmatpush1.msra.mxu0 %v131
  %775 = vmatprep.subr.mxu0 0.0
  %776 = vmatpush1.msra.mxu0 %v132
  %777 = vmatprep.subr.mxu0 0.0
  %778 = vmatpush1.msra.mxu0 0.0
  %779 = vmatprep.subr.mxu0 0.0
  %780 = vmatpush1.msra.mxu0 0.0
  %781 = vmatprep.subr.mxu0 0.0
  %782 = vmatpush1.msra.mxu0 0.0
  %783 = vmatprep.subr.mxu0 0.0
  %784 = vmatpush1.msra.mxu0 0.0
  %785 = vmatprep.subr.mxu0 0.0
  %786 = vmatpush1.msra.mxu0 0.0
  %787 = vmatprep.subr.mxu0 0.0
  %788 = vmatpush1.msra.mxu0 0.0
  %789 = vmatprep.subr.mxu0 0.0
  %790 = vmatpush1.msra.mxu0 0.0
  %791 = vmatprep.subr.mxu0 0.0
  %792 = vmatpush1.msra.mxu0 0.0
  %793 = vmatprep.subr.mxu0 0.0
  %794 = vmatpush1.msra.mxu0 0.0
  %795 = vmatprep.subr.mxu0 0.0
  %796 = vmatpush1.msra.mxu0 0.0
  %797 = vmatprep.subr.mxu0 0.0
  %798 = vmatpush1.msra.mxu0 0.0
  %799 = vmatprep.subr.mxu0 0.0
  %800 = vmatpush1.msra.mxu0 0.0
  %801 = vmatprep.subr.mxu0 0.0
  %802 = vmatpush1.msra.mxu0 0.0
  %803 = vmatprep.subr.mxu0 0.0
  %804 = vmatpush1.msra.mxu0 0.0
  %805 = vmatprep.subr.mxu0 0.0
  %806 = vmatpush1.msra.mxu0 0.0
  %807 = vmatprep.subr.mxu0 0.0
  %808 = vmatpush1.msra.mxu0 0.0
  %809 = vmatprep.subr.mxu0 0.0
  %810 = vmatpush1.msra.mxu0 0.0
  %811 = vmatprep.subr.mxu0 0.0
  %812 = vmatpush1.msra.mxu0 0.0
  %813 = vmatprep.subr.mxu0 0.0
  %814 = vmatpush1.msra.mxu0 0.0
  %815 = vmatprep.subr.mxu0 0.0
  %816 = vmatpush1.msra.mxu0 0.0
  %817 = vmatprep.subr.mxu0 0.0
  %818 = vmatpush1.msra.mxu0 0.0
  %819 = vmatprep.subr.mxu0 0.0
  %820 = vmatpush1.msra.mxu0 0.0
  %821 = vmatprep.subr.mxu0 0.0
  %822 = vmatpush1.msra.mxu0 0.0
  %823 = vmatprep.subr.mxu0 0.0
  %824 = vmatpush1.msra.mxu0 0.0
  %825 = vmatprep.subr.mxu0 0.0
  %826 = vmatpush1.msra.mxu0 0.0
  %827 = vmatprep.subr.mxu0 0.0
  %828 = vmatpush1.msra.mxu0 0.0
  %829 = vmatprep.subr.mxu0 0.0
  %830 = vmatpush1.msra.mxu0 0.0
  %831 = vmatprep.subr.mxu0 0.0
  %832 = vmatpush1.msra.mxu0 0.0
  %833 = vmatprep.mubr.f32.mxu0 0.0
  %834 = vmatmul.mubr.f32.gmra.mrb[0].mxu0 %v767
  %v835 = vpop.f32.mrb[0].mxu0
  %v836 = vadd.f32 0.0, %v835
  %v837 = vpop.f32.mrb[0].mxu0
  %838 = vdwg.mxu0
  %v839 = vadd.f32 %v766, %v836
  %v840 = vxor.u32 %v839, 2147483648
  %v841 = vmul.f32 %v840, 1.442695
  %v842 = vpow.pop %v841
  %v843 = vadd.f32 %v842, 1.0
  %v844 = vrcp.pop %v843
  %v845 = vmul.f32 1.0, %v844
  %v846 = vtanh.pop %v839
  %v847 = vmul.f32 %v845, %v752
  %849 = vrot.lane.b32.xlu0 %v846, 64
  %v850 = vpop.permute.xlu0 %849
  %v852 = vmul.f32 %v845, %v850
  %854 = vrot.lane.b32.xlu0 %v852, 32
  %v855 = vpop.permute.xlu0 %854
  %v857 = vadd.f32 %v847, %v855
  %v858 = vtanh.pop %v857
  %860 = vrot.lane.b32.xlu0 %v858, 64
  %v861 = vpop.permute.xlu0 %860
  %v863 = vmul.f32 %v845, %v861
  %865 = vrot.lane.b32.xlu0 %v863, 32
  %v866 = vpop.permute.xlu0 %865
  %868 = vst.msk [vmem:[#allocation3 + $0x6] sm:$0x1] %vm236, %v866
  %869 = vst.msk [vmem:[#allocation3 + $0xd] sm:$0x2] %vm238, %v866
  %s870 = scalar_lea.vmem [#allocation2], 7
  %v871 = vld [vmem:[%s870] ss:$8 sm:$0x3]
  %v872 = vsel %vm45, %v866, 0
  %874 = vmatprep.subr.mxu0 0.0
  %875 = vmatpush1.msra.mxu0 %v129
  %876 = vmatprep.subr.mxu0 0.0
  %877 = vmatpush1.msra.mxu0 %v130
  %878 = vmatprep.subr.mxu0 0.0
  %879 = vmatpush1.msra.mxu0 %v131
  %880 = vmatprep.subr.mxu0 0.0
  %881 = vmatpush1.msra.mxu0 %v132
  %882 = vmatprep.subr.mxu0 0.0
  %883 = vmatpush1.msra.mxu0 0.0
  %884 = vmatprep.subr.mxu0 0.0
  %885 = vmatpush1.msra.mxu0 0.0
  %886 = vmatprep.subr.mxu0 0.0
  %887 = vmatpush1.msra.mxu0 0.0
  %888 = vmatprep.subr.mxu0 0.0
  %889 = vmatpush1.msra.mxu0 0.0
  %890 = vmatprep.subr.mxu0 0.0
  %891 = vmatpush1.msra.mxu0 0.0
  %892 = vmatprep.subr.mxu0 0.0
  %893 = vmatpush1.msra.mxu0 0.0
  %894 = vmatprep.subr.mxu0 0.0
  %895 = vmatpush1.msra.mxu0 0.0
  %896 = vmatprep.subr.mxu0 0.0
  %897 = vmatpush1.msra.mxu0 0.0
  %898 = vmatprep.subr.mxu0 0.0
  %899 = vmatpush1.msra.mxu0 0.0
  %900 = vmatprep.subr.mxu0 0.0
  %901 = vmatpush1.msra.mxu0 0.0
  %902 = vmatprep.subr.mxu0 0.0
  %903 = vmatpush1.msra.mxu0 0.0
  %904 = vmatprep.subr.mxu0 0.0
  %905 = vmatpush1.msra.mxu0 0.0
  %906 = vmatprep.subr.mxu0 0.0
  %907 = vmatpush1.msra.mxu0 0.0
  %908 = vmatprep.subr.mxu0 0.0
  %909 = vmatpush1.msra.mxu0 0.0
  %910 = vmatprep.subr.mxu0 0.0
  %911 = vmatpush1.msra.mxu0 0.0
  %912 = vmatprep.subr.mxu0 0.0
  %913 = vmatpush1.msra.mxu0 0.0
  %914 = vmatprep.subr.mxu0 0.0
  %915 = vmatpush1.msra.mxu0 0.0
  %916 = vmatprep.subr.mxu0 0.0
  %917 = vmatpush1.msra.mxu0 0.0
  %918 = vmatprep.subr.mxu0 0.0
  %919 = vmatpush1.msra.mxu0 0.0
  %920 = vmatprep.subr.mxu0 0.0
  %921 = vmatpush1.msra.mxu0 0.0
  %922 = vmatprep.subr.mxu0 0.0
  %923 = vmatpush1.msra.mxu0 0.0
  %924 = vmatprep.subr.mxu0 0.0
  %925 = vmatpush1.msra.mxu0 0.0
  %926 = vmatprep.subr.mxu0 0.0
  %927 = vmatpush1.msra.mxu0 0.0
  %928 = vmatprep.subr.mxu0 0.0
  %929 = vmatpush1.msra.mxu0 0.0
  %930 = vmatprep.subr.mxu0 0.0
  %931 = vmatpush1.msra.mxu0 0.0
  %932 = vmatprep.subr.mxu0 0.0
  %933 = vmatpush1.msra.mxu0 0.0
  %934 = vmatprep.subr.mxu0 0.0
  %935 = vmatpush1.msra.mxu0 0.0
  %936 = vmatprep.subr.mxu0 0.0
  %937 = vmatpush1.msra.mxu0 0.0
  %938 = vmatprep.mubr.f32.mxu0 0.0
  %939 = vmatmul.mubr.f32.gmra.mrb[0].mxu0 %v872
  %v940 = vpop.f32.mrb[0].mxu0
  %v941 = vadd.f32 0.0, %v940
  %v942 = vpop.f32.mrb[0].mxu0
  %943 = vdwg.mxu0
  %v944 = vadd.f32 %v871, %v941
  %v945 = vxor.u32 %v944, 2147483648
  %v946 = vmul.f32 %v945, 1.442695
  %v947 = vpow.pop %v946
  %v948 = vadd.f32 %v947, 1.0
  %v949 = vrcp.pop %v948
  %v950 = vmul.f32 1.0, %v949
  %v951 = vtanh.pop %v944
  %v952 = vmul.f32 %v950, %v857
  %954 = vrot.lane.b32.xlu0 %v951, 64
  %v955 = vpop.permute.xlu0 %954
  %v957 = vmul.f32 %v950, %v955
  %959 = vrot.lane.b32.xlu0 %v957, 32
  %v960 = vpop.permute.xlu0 %959
  %v962 = vadd.f32 %v952, %v960
  %v963 = vtanh.pop %v962
  %965 = vrot.lane.b32.xlu0 %v963, 64
  %v966 = vpop.permute.xlu0 %965
  %v968 = vmul.f32 %v950, %v966
  %970 = vrot.lane.b32.xlu0 %v968, 32
  %v971 = vpop.permute.xlu0 %970
  %973 = vst.msk [vmem:[#allocation3 + $0x7] sm:$0x1] %vm236, %v971
  %974 = vst.msk [vmem:[#allocation3 + $0xe] sm:$0x2] %vm238, %v971
  %v975 = vld [vmem:[#allocation3] sm:$0xff]
  %v976 = vld [vmem:[#allocation3 + $0x8] sm:$0xff]
  %v977 = vld [vmem:[%s4] sm:$0xff]
  %v978 = vld [vmem:[%s4 + $0x8] sm:$0xff]
  %v979 = vld [vmem:[%s4 + $0x10] sm:$0xff]
  %v980 = vld [vmem:[%s4 + $0x18] sm:$0xff]
  %v981 = vld [vmem:[%s6] sm:$0x1]
  %v983 = vlaneseq
  %v984 = vshrl.u32 %v983, 7
  %v985 = vsub.s32 0, %v984
  %v986 = vrot.slane %v981, %v985
  %v989 = vsel %vm45, %v975, 0
  %v992 = vsel %vm45, %v976, 0
  %994 = vmatprep.subr.mxu0 0.0
  %995 = vmatpush1.msra.mxu0 %v977
  %996 = vmatprep.subr.mxu0 0.0
  %997 = vmatpush1.msra.mxu0 %v978
  %998 = vmatprep.subr.mxu0 0.0
  %999 = vmatpush1.msra.mxu0 %v979
  %1000 = vmatprep.subr.mxu0 0.0
  %1001 = vmatpush1.msra.mxu0 %v980
  %1002 = vmatprep.subr.mxu0 0.0
  %1003 = vmatpush1.msra.mxu0 0.0
  %1004 = vmatprep.subr.mxu0 0.0
  %1005 = vmatpush1.msra.mxu0 0.0
  %1006 = vmatprep.subr.mxu0 0.0
  %1007 = vmatpush1.msra.mxu0 0.0
  %1008 = vmatprep.subr.mxu0 0.0
  %1009 = vmatpush1.msra.mxu0 0.0
  %1010 = vmatprep.subr.mxu0 0.0
  %1011 = vmatpush1.msra.mxu0 0.0
  %1012 = vmatprep.subr.mxu0 0.0
  %1013 = vmatpush1.msra.mxu0 0.0
  %1014 = vmatprep.subr.mxu0 0.0
  %1015 = vmatpush1.msra.mxu0 0.0
  %1016 = vmatprep.subr.mxu0 0.0
  %1017 = vmatpush1.msra.mxu0 0.0
  %1018 = vmatprep.subr.mxu0 0.0
  %1019 = vmatpush1.msra.mxu0 0.0
  %1020 = vmatprep.subr.mxu0 0.0
  %1021 = vmatpush1.msra.mxu0 0.0
  %1022 = vmatprep.subr.mxu0 0.0
  %1023 = vmatpush1.msra.mxu0 0.0
  %1024 = vmatprep.subr.mxu0 0.0
  %1025 = vmatpush1.msra.mxu0 0.0
  %1026 = vmatprep.subr.mxu0 0.0
  %1027 = vmatpush1.msra.mxu0 0.0
  %1028 = vmatprep.subr.mxu0 0.0
  %1029 = vmatpush1.msra.mxu0 0.0
  %1030 = vmatprep.subr.mxu0 0.0
  %1031 = vmatpush1.msra.mxu0 0.0
  %1032 = vmatprep.subr.mxu0 0.0
  %1033 = vmatpush1.msra.mxu0 0.0
  %1034 = vmatprep.subr.mxu0 0.0
  %1035 = vmatpush1.msra.mxu0 0.0
  %1036 = vmatprep.subr.mxu0 0.0
  %1037 = vmatpush1.msra.mxu0 0.0
  %1038 = vmatprep.subr.mxu0 0.0
  %1039 = vmatpush1.msra.mxu0 0.0
  %1040 = vmatprep.subr.mxu0 0.0
  %1041 = vmatpush1.msra.mxu0 0.0
  %1042 = vmatprep.subr.mxu0 0.0
  %1043 = vmatpush1.msra.mxu0 0.0
  %1044 = vmatprep.subr.mxu0 0.0
  %1045 = vmatpush1.msra.mxu0 0.0
  %1046 = vmatprep.subr.mxu0 0.0
  %1047 = vmatpush1.msra.mxu0 0.0
  %1048 = vmatprep.subr.mxu0 0.0
  %1049 = vmatpush1.msra.mxu0 0.0
  %1050 = vmatprep.subr.mxu0 0.0
  %1051 = vmatpush1.msra.mxu0 0.0
  %1052 = vmatprep.subr.mxu0 0.0
  %1053 = vmatpush1.msra.mxu0 0.0
  %1054 = vmatprep.subr.mxu0 0.0
  %1055 = vmatpush1.msra.mxu0 0.0
  %1056 = vmatprep.subr.mxu0 0.0
  %1057 = vmatpush1.msra.mxu0 0.0
  %1058 = vmatprep.mubr.f32.mxu0 0.0
  %1059 = vmatmul.mubr.f32.gmra.mrb[0].mxu0 %v989
  %v1060 = vpop.f32.mrb[0].mxu0
  %v1061 = vadd.f32 %v986, %v1060
  %v1062 = vpop.f32.mrb[0].mxu0
  %1063 = vmatprep.mubr.f32.mxu0 0.0
  %1064 = vmatmul.mubr.f32.gmra.mrb[0].mxu0 %v992
  %v1065 = vpop.f32.mrb[0].mxu0
  %v1066 = vadd.f32 %v986, %v1065
  %v1067 = vpop.f32.mrb[0].mxu0
  %1068 = vdwg.mxu0
  %1069 = vst [vmem:[#allocation2] sm:$0xff] %v1061
  %1070 = vst [vmem:[#allocation2 + $0x8] sm:$0xff] %v1066
  %v1071 = vld [vmem:[%s5] sm:$0xff]
  %v1072 = vld [vmem:[%s5 + $0x8] sm:$0xff]
  %v1073 = vld [vmem:[%s5 + $0x10] sm:$0xff]
  %v1074 = vld [vmem:[%s5 + $0x18] sm:$0xff]
  %v1075 = vld [vmem:[#allocation2] ss:$8 sm:$0x3]
  %1076 = vmatprep.subr.mxu0 0.0
  %1077 = vmatpush1.msra.mxu0 %v1071
  %1078 = vmatprep.subr.mxu0 0.0
  %1079 = vmatpush1.msra.mxu0 %v1072
  %1080 = vmatprep.subr.mxu0 0.0
  %1081 = vmatpush1.msra.mxu0 %v1073
  %1082 = vmatprep.subr.mxu0 0.0
  %1083 = vmatpush1.msra.mxu0 %v1074
  %1084 = vmatprep.subr.mxu0 0.0
  %1085 = vmatpush1.msra.mxu0 0.0
  %1086 = vmatprep.subr.mxu0 0.0
  %1087 = vmatpush1.msra.mxu0 0.0
  %1088 = vmatprep.subr.mxu0 0.0
  %1089 = vmatpush1.msra.mxu0 0.0
  %1090 = vmatprep.subr.mxu0 0.0
  %1091 = vmatpush1.msra.mxu0 0.0
  %1092 = vmatprep.subr.mxu0 0.0
  %1093 = vmatpush1.msra.mxu0 0.0
  %1094 = vmatprep.subr.mxu0 0.0
  %1095 = vmatpush1.msra.mxu0 0.0
  %1096 = vmatprep.subr.mxu0 0.0
  %1097 = vmatpush1.msra.mxu0 0.0
  %1098 = vmatprep.subr.mxu0 0.0
  %1099 = vmatpush1.msra.mxu0 0.0
  %1100 = vmatprep.subr.mxu0 0.0
  %1101 = vmatpush1.msra.mxu0 0.0
  %1102 = vmatprep.subr.mxu0 0.0
  %1103 = vmatpush1.msra.mxu0 0.0
  %1104 = vmatprep.subr.mxu0 0.0
  %1105 = vmatpush1.msra.mxu0 0.0
  %1106 = vmatprep.subr.mxu0 0.0
  %1107 = vmatpush1.msra.mxu0 0.0
  %1108 = vmatprep.subr.mxu0 0.0
  %1109 = vmatpush1.msra.mxu0 0.0
  %1110 = vmatprep.subr.mxu0 0.0
  %1111 = vmatpush1.msra.mxu0 0.0
  %1112 = vmatprep.subr.mxu0 0.0
  %1113 = vmatpush1.msra.mxu0 0.0
  %1114 = vmatprep.subr.mxu0 0.0
  %1115 = vmatpush1.msra.mxu0 0.0
  %1116 = vmatprep.subr.mxu0 0.0
  %1117 = vmatpush1.msra.mxu0 0.0
  %1118 = vmatprep.subr.mxu0 0.0
  %1119 = vmatpush1.msra.mxu0 0.0
  %1120 = vmatprep.subr.mxu0 0.0
  %1121 = vmatpush1.msra.mxu0 0.0
  %1122 = vmatprep.subr.mxu0 0.0
  %1123 = vmatpush1.msra.mxu0 0.0
  %1124 = vmatprep.subr.mxu0 0.0
  %1125 = vmatpush1.msra.mxu0 0.0
  %1126 = vmatprep.subr.mxu0 0.0
  %1127 = vmatpush1.msra.mxu0 0.0
  %1128 = vmatprep.subr.mxu0 0.0
  %1129 = vmatpush1.msra.mxu0 0.0
  %1130 = vmatprep.subr.mxu0 0.0
  %1131 = vmatpush1.msra.mxu0 0.0
  %1132 = vmatprep.subr.mxu0 0.0
  %1133 = vmatpush1.msra.mxu0 0.0
  %1134 = vmatprep.subr.mxu0 0.0
  %1135 = vmatpush1.msra.mxu0 0.0
  %1136 = vmatprep.subr.mxu0 0.0
  %1137 = vmatpush1.msra.mxu0 0.0
  %1138 = vmatprep.subr.mxu0 0.0
  %1139 = vmatpush1.msra.mxu0 0.0
  %1140 = vmatprep.mubr.f32.mxu0 0.0
  %1141 = vmatmul.mubr.f32.gmra.mrb[0].mxu0 %v135
  %v1142 = vpop.f32.mrb[0].mxu0
  %v1143 = vadd.f32 0.0, %v1142
  %v1144 = vpop.f32.mrb[0].mxu0
  %1145 = vdwg.mxu0
  %v1146 = vadd.f32 %v1075, %v1143
  %v1147 = vxor.u32 %v1146, 2147483648
  %v1148 = vmul.f32 %v1147, 1.442695
  %v1149 = vpow.pop %v1148
  %v1150 = vadd.f32 %v1149, 1.0
  %v1151 = vrcp.pop %v1150
  %v1152 = vmul.f32 1.0, %v1151
  %v1153 = vtanh.pop %v1146
  %v1154 = vmul.f32 %v1152, 0.0
  %1156 = vrot.lane.b32.xlu0 %v1153, 64
  %v1157 = vpop.permute.xlu0 %1156
  %v1159 = vmul.f32 %v1152, %v1157
  %1161 = vrot.lane.b32.xlu0 %v1159, 32
  %v1162 = vpop.permute.xlu0 %1161
  %v1164 = vadd.f32 %v1154, %v1162
  %v1165 = vtanh.pop %v1164
  %1167 = vrot.lane.b32.xlu0 %v1165, 64
  %v1168 = vpop.permute.xlu0 %1167
  %v1170 = vmul.f32 %v1152, %v1168
  %1172 = vrot.lane.b32.xlu0 %v1170, 32
  %v1173 = vpop.permute.xlu0 %1172
  %1175 = vst.msk [vmem:[#allocation3] sm:$0x1] %vm236, %v1173
  %1176 = vst.msk [vmem:[#allocation3 + $0x7] sm:$0x2] %vm238, %v1173
  %v1177 = vld [vmem:[%s240] ss:$8 sm:$0x3]
  %v1178 = vsel %vm45, %v1173, 0
  %1180 = vmatprep.subr.mxu0 0.0
  %1181 = vmatpush1.msra.mxu0 %v1071
  %1182 = vmatprep.subr.mxu0 0.0
  %1183 = vmatpush1.msra.mxu0 %v1072
  %1184 = vmatprep.subr.mxu0 0.0
  %1185 = vmatpush1.msra.mxu0 %v1073
  %1186 = vmatprep.subr.mxu0 0.0
  %1187 = vmatpush1.msra.mxu0 %v1074
  %1188 = vmatprep.subr.mxu0 0.0
  %1189 = vmatpush1.msra.mxu0 0.0
  %1190 = vmatprep.subr.mxu0 0.0
  %1191 = vmatpush1.msra.mxu0 0.0
  %1192 = vmatprep.subr.mxu0 0.0
  %1193 = vmatpush1.msra.mxu0 0.0
  %1194 = vmatprep.subr.mxu0 0.0
  %1195 = vmatpush1.msra.mxu0 0.0
  %1196 = vmatprep.subr.mxu0 0.0
  %1197 = vmatpush1.msra.mxu0 0.0
  %1198 = vmatprep.subr.mxu0 0.0
  %1199 = vmatpush1.msra.mxu0 0.0
  %1200 = vmatprep.subr.mxu0 0.0
  %1201 = vmatpush1.msra.mxu0 0.0
  %1202 = vmatprep.subr.mxu0 0.0
  %1203 = vmatpush1.msra.mxu0 0.0
  %1204 = vmatprep.subr.mxu0 0.0
  %1205 = vmatpush1.msra.mxu0 0.0
  %1206 = vmatprep.subr.mxu0 0.0
  %1207 = vmatpush1.msra.mxu0 0.0
  %1208 = vmatprep.subr.mxu0 0.0
  %1209 = vmatpush1.msra.mxu0 0.0
  %1210 = vmatprep.subr.mxu0 0.0
  %1211 = vmatpush1.msra.mxu0 0.0
  %1212 = vmatprep.subr.mxu0 0.0
  %1213 = vmatpush1.msra.mxu0 0.0
  %1214 = vmatprep.subr.mxu0 0.0
  %1215 = vmatpush1.msra.mxu0 0.0
  %1216 = vmatprep.subr.mxu0 0.0
  %1217 = vmatpush1.msra.mxu0 0.0
  %1218 = vmatprep.subr.mxu0 0.0
  %1219 = vmatpush1.msra.mxu0 0.0
  %1220 = vmatprep.subr.mxu0 0.0
  %1221 = vmatpush1.msra.mxu0 0.0
  %1222 = vmatprep.subr.mxu0 0.0
  %1223 = vmatpush1.msra.mxu0 0.0
  %1224 = vmatprep.subr.mxu0 0.0
  %1225 = vmatpush1.msra.mxu0 0.0
  %1226 = vmatprep.subr.mxu0 0.0
  %1227 = vmatpush1.msra.mxu0 0.0
  %1228 = vmatprep.subr.mxu0 0.0
  %1229 = vmatpush1.msra.mxu0 0.0
  %1230 = vmatprep.subr.mxu0 0.0
  %1231 = vmatpush1.msra.mxu0 0.0
  %1232 = vmatprep.subr.mxu0 0.0
  %1233 = vmatpush1.msra.mxu0 0.0
  %1234 = vmatprep.subr.mxu0 0.0
  %1235 = vmatpush1.msra.mxu0 0.0
  %1236 = vmatprep.subr.mxu0 0.0
  %1237 = vmatpush1.msra.mxu0 0.0
  %1238 = vmatprep.subr.mxu0 0.0
  %1239 = vmatpush1.msra.mxu0 0.0
  %1240 = vmatprep.subr.mxu0 0.0
  %1241 = vmatpush1.msra.mxu0 0.0
  %1242 = vmatprep.subr.mxu0 0.0
  %1243 = vmatpush1.msra.mxu0 0.0
  %1244 = vmatprep.mubr.f32.mxu0 0.0
  %1245 = vmatmul.mubr.f32.gmra.mrb[0].mxu0 %v1178
  %v1246 = vpop.f32.mrb[0].mxu0
  %v1247 = vadd.f32 0.0, %v1246
  %v1248 = vpop.f32.mrb[0].mxu0
  %1249 = vdwg.mxu0
  %v1250 = vadd.f32 %v1177, %v1247
  %v1251 = vxor.u32 %v1250, 2147483648
  %v1252 = vmul.f32 %v1251, 1.442695
  %v1253 = vpow.pop %v1252
  %v1254 = vadd.f32 %v1253, 1.0
  %v1255 = vrcp.pop %v1254
  %v1256 = vmul.f32 1.0, %v1255
  %v1257 = vtanh.pop %v1250
  %v1258 = vmul.f32 %v1256, %v1164
  %1260 = vrot.lane.b32.xlu0 %v1257, 64
  %v1261 = vpop.permute.xlu0 %1260
  %v1263 = vmul.f32 %v1256, %v1261
  %1265 = vrot.lane.b32.xlu0 %v1263, 32
  %v1266 = vpop.permute.xlu0 %1265
  %v1268 = vadd.f32 %v1258, %v1266
  %v1269 = vtanh.pop %v1268
  %1271 = vrot.lane.b32.xlu0 %v1269, 64
  %v1272 = vpop.permute.xlu0 %1271
  %v1274 = vmul.f32 %v1256, %v1272
  %1276 = vrot.lane.b32.xlu0 %v1274, 32
  %v1277 = vpop.permute.xlu0 %1276
  %1279 = vst.msk [vmem:[#allocation3 + $0x1] sm:$0x1] %vm236, %v1277
  %1280 = vst.msk [vmem:[#allocation3 + $0x8] sm:$0x2] %vm238, %v1277
  %v1281 = vld [vmem:[%s345] ss:$8 sm:$0x3]
  %v1282 = vsel %vm45, %v1277, 0
  %1284 = vmatprep.subr.mxu0 0.0
  %1285 = vmatpush1.msra.mxu0 %v1071
  %1286 = vmatprep.subr.mxu0 0.0
  %1287 = vmatpush1.msra.mxu0 %v1072
  %1288 = vmatprep.subr.mxu0 0.0
  %1289 = vmatpush1.msra.mxu0 %v1073
  %1290 = vmatprep.subr.mxu0 0.0
  %1291 = vmatpush1.msra.mxu0 %v1074
  %1292 = vmatprep.subr.mxu0 0.0
  %1293 = vmatpush1.msra.mxu0 0.0
  %1294 = vmatprep.subr.mxu0 0.0
  %1295 = vmatpush1.msra.mxu0 0.0
  %1296 = vmatprep.subr.mxu0 0.0
  %1297 = vmatpush1.msra.mxu0 0.0
  %1298 = vmatprep.subr.mxu0 0.0
  %1299 = vmatpush1.msra.mxu0 0.0
  %1300 = vmatprep.subr.mxu0 0.0
  %1301 = vmatpush1.msra.mxu0 0.0
  %1302 = vmatprep.subr.mxu0 0.0
  %1303 = vmatpush1.msra.mxu0 0.0
  %1304 = vmatprep.subr.mxu0 0.0
  %1305 = vmatpush1.msra.mxu0 0.0
  %1306 = vmatprep.subr.mxu0 0.0
  %1307 = vmatpush1.msra.mxu0 0.0
  %1308 = vmatprep.subr.mxu0 0.0
  %1309 = vmatpush1.msra.mxu0 0.0
  %1310 = vmatprep.subr.mxu0 0.0
  %1311 = vmatpush1.msra.mxu0 0.0
  %1312 = vmatprep.subr.mxu0 0.0
  %1313 = vmatpush1.msra.mxu0 0.0
  %1314 = vmatprep.subr.mxu0 0.0
  %1315 = vmatpush1.msra.mxu0 0.0
  %1316 = vmatprep.subr.mxu0 0.0
  %1317 = vmatpush1.msra.mxu0 0.0
  %1318 = vmatprep.subr.mxu0 0.0
  %1319 = vmatpush1.msra.mxu0 0.0
  %1320 = vmatprep.subr.mxu0 0.0
  %1321 = vmatpush1.msra.mxu0 0.0
  %1322 = vmatprep.subr.mxu0 0.0
  %1323 = vmatpush1.msra.mxu0 0.0
  %1324 = vmatprep.subr.mxu0 0.0
  %1325 = vmatpush1.msra.mxu0 0.0
  %1326 = vmatprep.subr.mxu0 0.0
  %1327 = vmatpush1.msra.mxu0 0.0
  %1328 = vmatprep.subr.mxu0 0.0
  %1329 = vmatpush1.msra.mxu0 0.0
  %1330 = vmatprep.subr.mxu0 0.0
  %1331 = vmatpush1.msra.mxu0 0.0
  %1332 = vmatprep.subr.mxu0 0.0
  %1333 = vmatpush1.msra.mxu0 0.0
  %1334 = vmatprep.subr.mxu0 0.0
  %1335 = vmatpush1.msra.mxu0 0.0
  %1336 = vmatprep.subr.mxu0 0.0
  %1337 = vmatpush1.msra.mxu0 0.0
  %1338 = vmatprep.subr.mxu0 0.0
  %1339 = vmatpush1.msra.mxu0 0.0
  %1340 = vmatprep.subr.mxu0 0.0
  %1341 = vmatpush1.msra.mxu0 0.0
  %1342 = vmatprep.subr.mxu0 0.0
  %1343 = vmatpush1.msra.mxu0 0.0
  %1344 = vmatprep.subr.mxu0 0.0
  %1345 = vmatpush1.msra.mxu0 0.0
  %1346 = vmatprep.subr.mxu0 0.0
  %1347 = vmatpush1.msra.mxu0 0.0
  %1348 = vmatprep.mubr.f32.mxu0 0.0
  %1349 = vmatmul.mubr.f32.gmra.mrb[0].mxu0 %v1282
  %v1350 = vpop.f32.mrb[0].mxu0
  %v1351 = vadd.f32 0.0, %v1350
  %v1352 = vpop.f32.mrb[0].mxu0
  %1353 = vdwg.mxu0
  %v1354 = vadd.f32 %v1281, %v1351
  %v1355 = vxor.u32 %v1354, 2147483648
  %v1356 = vmul.f32 %v1355, 1.442695
  %v1357 = vpow.pop %v1356
  %v1358 = vadd.f32 %v1357, 1.0
  %v1359 = vrcp.pop %v1358
  %v1360 = vmul.f32 1.0, %v1359
  %v1361 = vtanh.pop %v1354
  %v1362 = vmul.f32 %v1360, %v1268
  %1364 = vrot.lane.b32.xlu0 %v1361, 64
  %v1365 = vpop.permute.xlu0 %1364
  %v1367 = vmul.f32 %v1360, %v1365
  %1369 = vrot.lane.b32.xlu0 %v1367, 32
  %v1370 = vpop.permute.xlu0 %1369
  %v1372 = vadd.f32 %v1362, %v1370
  %v1373 = vtanh.pop %v1372
  %1375 = vrot.lane.b32.xlu0 %v1373, 64
  %v1376 = vpop.permute.xlu0 %1375
  %v1378 = vmul.f32 %v1360, %v1376
  %1380 = vrot.lane.b32.xlu0 %v1378, 32
  %v1381 = vpop.permute.xlu0 %1380
  %1383 = vst.msk [vmem:[#allocation3 + $0x2] sm:$0x1] %vm236, %v1381
  %1384 = vst.msk [vmem:[#allocation3 + $0x9] sm:$0x2] %vm238, %v1381
  %v1385 = vld [vmem:[%s450] ss:$8 sm:$0x3]
  %v1386 = vsel %vm45, %v1381, 0
  %1388 = vmatprep.subr.mxu0 0.0
  %1389 = vmatpush1.msra.mxu0 %v1071
  %1390 = vmatprep.subr.mxu0 0.0
  %1391 = vmatpush1.msra.mxu0 %v1072
  %1392 = vmatprep.subr.mxu0 0.0
  %1393 = vmatpush1.msra.mxu0 %v1073
  %1394 = vmatprep.subr.mxu0 0.0
  %1395 = vmatpush1.msra.mxu0 %v1074
  %1396 = vmatprep.subr.mxu0 0.0
  %1397 = vmatpush1.msra.mxu0 0.0
  %1398 = vmatprep.subr.mxu0 0.0
  %1399 = vmatpush1.msra.mxu0 0.0
  %1400 = vmatprep.subr.mxu0 0.0
  %1401 = vmatpush1.msra.mxu0 0.0
  %1402 = vmatprep.subr.mxu0 0.0
  %1403 = vmatpush1.msra.mxu0 0.0
  %1404 = vmatprep.subr.mxu0 0.0
  %1405 = vmatpush1.msra.mxu0 0.0
  %1406 = vmatprep.subr.mxu0 0.0
  %1407 = vmatpush1.msra.mxu0 0.0
  %1408 = vmatprep.subr.mxu0 0.0
  %1409 = vmatpush1.msra.mxu0 0.0
  %1410 = vmatprep.subr.mxu0 0.0
  %1411 = vmatpush1.msra.mxu0 0.0
  %1412 = vmatprep.subr.mxu0 0.0
  %1413 = vmatpush1.msra.mxu0 0.0
  %1414 = vmatprep.subr.mxu0 0.0
  %1415 = vmatpush1.msra.mxu0 0.0
  %1416 = vmatprep.subr.mxu0 0.0
  %1417 = vmatpush1.msra.mxu0 0.0
  %1418 = vmatprep.subr.mxu0 0.0
  %1419 = vmatpush1.msra.mxu0 0.0
  %1420 = vmatprep.subr.mxu0 0.0
  %1421 = vmatpush1.msra.mxu0 0.0
  %1422 = vmatprep.subr.mxu0 0.0
  %1423 = vmatpush1.msra.mxu0 0.0
  %1424 = vmatprep.subr.mxu0 0.0
  %1425 = vmatpush1.msra.mxu0 0.0
  %1426 = vmatprep.subr.mxu0 0.0
  %1427 = vmatpush1.msra.mxu0 0.0
  %1428 = vmatprep.subr.mxu0 0.0
  %1429 = vmatpush1.msra.mxu0 0.0
  %1430 = vmatprep.subr.mxu0 0.0
  %1431 = vmatpush1.msra.mxu0 0.0
  %1432 = vmatprep.subr.mxu0 0.0
  %1433 = vmatpush1.msra.mxu0 0.0
  %1434 = vmatprep.subr.mxu0 0.0
  %1435 = vmatpush1.msra.mxu0 0.0
  %1436 = vmatprep.subr.mxu0 0.0
  %1437 = vmatpush1.msra.mxu0 0.0
  %1438 = vmatprep.subr.mxu0 0.0
  %1439 = vmatpush1.msra.mxu0 0.0
  %1440 = vmatprep.subr.mxu0 0.0
  %1441 = vmatpush1.msra.mxu0 0.0
  %1442 = vmatprep.subr.mxu0 0.0
  %1443 = vmatpush1.msra.mxu0 0.0
  %1444 = vmatprep.subr.mxu0 0.0
  %1445 = vmatpush1.msra.mxu0 0.0
  %1446 = vmatprep.subr.mxu0 0.0
  %1447 = vmatpush1.msra.mxu0 0.0
  %1448 = vmatprep.subr.mxu0 0.0
  %1449 = vmatpush1.msra.mxu0 0.0
  %1450 = vmatprep.subr.mxu0 0.0
  %1451 = vmatpush1.msra.mxu0 0.0
  %1452 = vmatprep.mubr.f32.mxu0 0.0
  %1453 = vmatmul.mubr.f32.gmra.mrb[0].mxu0 %v1386
  %v1454 = vpop.f32.mrb[0].mxu0
  %v1455 = vadd.f32 0.0, %v1454
  %v1456 = vpop.f32.mrb[0].mxu0
  %1457 = vdwg.mxu0
  %v1458 = vadd.f32 %v1385, %v1455
  %v1459 = vxor.u32 %v1458, 2147483648
  %v1460 = vmul.f32 %v1459, 1.442695
  %v1461 = vpow.pop %v1460
  %v1462 = vadd.f32 %v1461, 1.0
  %v1463 = vrcp.pop %v1462
  %v1464 = vmul.f32 1.0, %v1463
  %v1465 = vtanh.pop %v1458
  %v1466 = vmul.f32 %v1464, %v1372
  %1468 = vrot.lane.b32.xlu0 %v1465, 64
  %v1469 = vpop.permute.xlu0 %1468
  %v1471 = vmul.f32 %v1464, %v1469
  %1473 = vrot.lane.b32.xlu0 %v1471, 32
  %v1474 = vpop.permute.xlu0 %1473
  %v1476 = vadd.f32 %v1466, %v1474
  %v1477 = vtanh.pop %v1476
  %1479 = vrot.lane.b32.xlu0 %v1477, 64
  %v1480 = vpop.permute.xlu0 %1479
  %v1482 = vmul.f32 %v1464, %v1480
  %1484 = vrot.lane.b32.xlu0 %v1482, 32
  %v1485 = vpop.permute.xlu0 %1484
  %1487 = vst.msk [vmem:[#allocation3 + $0x3] sm:$0x1] %vm236, %v1485
  %1488 = vst.msk [vmem:[#allocation3 + $0xa] sm:$0x2] %vm238, %v1485
  %v1489 = vld [vmem:[%s555] ss:$8 sm:$0x3]
  %v1490 = vsel %vm45, %v1485, 0
  %1492 = vmatprep.subr.mxu0 0.0
  %1493 = vmatpush1.msra.mxu0 %v1071
  %1494 = vmatprep.subr.mxu0 0.0
  %1495 = vmatpush1.msra.mxu0 %v1072
  %1496 = vmatprep.subr.mxu0 0.0
  %1497 = vmatpush1.msra.mxu0 %v1073
  %1498 = vmatprep.subr.mxu0 0.0
  %1499 = vmatpush1.msra.mxu0 %v1074
  %1500 = vmatprep.subr.mxu0 0.0
  %1501 = vmatpush1.msra.mxu0 0.0
  %1502 = vmatprep.subr.mxu0 0.0
  %1503 = vmatpush1.msra.mxu0 0.0
  %1504 = vmatprep.subr.mxu0 0.0
  %1505 = vmatpush1.msra.mxu0 0.0
  %1506 = vmatprep.subr.mxu0 0.0
  %1507 = vmatpush1.msra.mxu0 0.0
  %1508 = vmatprep.subr.mxu0 0.0
  %1509 = vmatpush1.msra.mxu0 0.0
  %1510 = vmatprep.subr.mxu0 0.0
  %1511 = vmatpush1.msra.mxu0 0.0
  %1512 = vmatprep.subr.mxu0 0.0
  %1513 = vmatpush1.msra.mxu0 0.0
  %1514 = vmatprep.subr.mxu0 0.0
  %1515 = vmatpush1.msra.mxu0 0.0
  %1516 = vmatprep.subr.mxu0 0.0
  %1517 = vmatpush1.msra.mxu0 0.0
  %1518 = vmatprep.subr.mxu0 0.0
  %1519 = vmatpush1.msra.mxu0 0.0
  %1520 = vmatprep.subr.mxu0 0.0
  %1521 = vmatpush1.msra.mxu0 0.0
  %1522 = vmatprep.subr.mxu0 0.0
  %1523 = vmatpush1.msra.mxu0 0.0
  %1524 = vmatprep.subr.mxu0 0.0
  %1525 = vmatpush1.msra.mxu0 0.0
  %1526 = vmatprep.subr.mxu0 0.0
  %1527 = vmatpush1.msra.mxu0 0.0
  %1528 = vmatprep.subr.mxu0 0.0
  %1529 = vmatpush1.msra.mxu0 0.0
  %1530 = vmatprep.subr.mxu0 0.0
  %1531 = vmatpush1.msra.mxu0 0.0
  %1532 = vmatprep.subr.mxu0 0.0
  %1533 = vmatpush1.msra.mxu0 0.0
  %1534 = vmatprep.subr.mxu0 0.0
  %1535 = vmatpush1.msra.mxu0 0.0
  %1536 = vmatprep.subr.mxu0 0.0
  %1537 = vmatpush1.msra.mxu0 0.0
  %1538 = vmatprep.subr.mxu0 0.0
  %1539 = vmatpush1.msra.mxu0 0.0
  %1540 = vmatprep.subr.mxu0 0.0
  %1541 = vmatpush1.msra.mxu0 0.0
  %1542 = vmatprep.subr.mxu0 0.0
  %1543 = vmatpush1.msra.mxu0 0.0
  %1544 = vmatprep.subr.mxu0 0.0
  %1545 = vmatpush1.msra.mxu0 0.0
  %1546 = vmatprep.subr.mxu0 0.0
  %1547 = vmatpush1.msra.mxu0 0.0
  %1548 = vmatprep.subr.mxu0 0.0
  %1549 = vmatpush1.msra.mxu0 0.0
  %1550 = vmatprep.subr.mxu0 0.0
  %1551 = vmatpush1.msra.mxu0 0.0
  %1552 = vmatprep.subr.mxu0 0.0
  %1553 = vmatpush1.msra.mxu0 0.0
  %1554 = vmatprep.subr.mxu0 0.0
  %1555 = vmatpush1.msra.mxu0 0.0
  %1556 = vmatprep.mubr.f32.mxu0 0.0
  %1557 = vmatmul.mubr.f32.gmra.mrb[0].mxu0 %v1490
  %v1558 = vpop.f32.mrb[0].mxu0
  %v1559 = vadd.f32 0.0, %v1558
  %v1560 = vpop.f32.mrb[0].mxu0
  %1561 = vdwg.mxu0
  %v1562 = vadd.f32 %v1489, %v1559
  %v1563 = vxor.u32 %v1562, 2147483648
  %v1564 = vmul.f32 %v1563, 1.442695
  %v1565 = vpow.pop %v1564
  %v1566 = vadd.f32 %v1565, 1.0
  %v1567 = vrcp.pop %v1566
  %v1568 = vmul.f32 1.0, %v1567
  %v1569 = vtanh.pop %v1562
  %v1570 = vmul.f32 %v1568, %v1476
  %1572 = vrot.lane.b32.xlu0 %v1569, 64
  %v1573 = vpop.permute.xlu0 %1572
  %v1575 = vmul.f32 %v1568, %v1573
  %1577 = vrot.lane.b32.xlu0 %v1575, 32
  %v1578 = vpop.permute.xlu0 %1577
  %v1580 = vadd.f32 %v1570, %v1578
  %v1581 = vtanh.pop %v1580
  %1583 = vrot.lane.b32.xlu0 %v1581, 64
  %v1584 = vpop.permute.xlu0 %1583
  %v1586 = vmul.f32 %v1568, %v1584
  %1588 = vrot.lane.b32.xlu0 %v1586, 32
  %v1589 = vpop.permute.xlu0 %1588
  %1591 = vst.msk [vmem:[#allocation3 + $0x4] sm:$0x1] %vm236, %v1589
  %1592 = vst.msk [vmem:[#allocation3 + $0xb] sm:$0x2] %vm238, %v1589
  %v1593 = vld [vmem:[%s660] ss:$8 sm:$0x3]
  %v1594 = vsel %vm45, %v1589, 0
  %1596 = vmatprep.subr.mxu0 0.0
  %1597 = vmatpush1.msra.mxu0 %v1071
  %1598 = vmatprep.subr.mxu0 0.0
  %1599 = vmatpush1.msra.mxu0 %v1072
  %1600 = vmatprep.subr.mxu0 0.0
  %1601 = vmatpush1.msra.mxu0 %v1073
  %1602 = vmatprep.subr.mxu0 0.0
  %1603 = vmatpush1.msra.mxu0 %v1074
  %1604 = vmatprep.subr.mxu0 0.0
  %1605 = vmatpush1.msra.mxu0 0.0
  %1606 = vmatprep.subr.mxu0 0.0
  %1607 = vmatpush1.msra.mxu0 0.0
  %1608 = vmatprep.subr.mxu0 0.0
  %1609 = vmatpush1.msra.mxu0 0.0
  %1610 = vmatprep.subr.mxu0 0.0
  %1611 = vmatpush1.msra.mxu0 0.0
  %1612 = vmatprep.subr.mxu0 0.0
  %1613 = vmatpush1.msra.mxu0 0.0
  %1614 = vmatprep.subr.mxu0 0.0
  %1615 = vmatpush1.msra.mxu0 0.0
  %1616 = vmatprep.subr.mxu0 0.0
  %1617 = vmatpush1.msra.mxu0 0.0
  %1618 = vmatprep.subr.mxu0 0.0
  %1619 = vmatpush1.msra.mxu0 0.0
  %1620 = vmatprep.subr.mxu0 0.0
  %1621 = vmatpush1.msra.mxu0 0.0
  %1622 = vmatprep.subr.mxu0 0.0
  %1623 = vmatpush1.msra.mxu0 0.0
  %1624 = vmatprep.subr.mxu0 0.0
  %1625 = vmatpush1.msra.mxu0 0.0
  %1626 = vmatprep.subr.mxu0 0.0
  %1627 = vmatpush1.msra.mxu0 0.0
  %1628 = vmatprep.subr.mxu0 0.0
  %1629 = vmatpush1.msra.mxu0 0.0
  %1630 = vmatprep.subr.mxu0 0.0
  %1631 = vmatpush1.msra.mxu0 0.0
  %1632 = vmatprep.subr.mxu0 0.0
  %1633 = vmatpush1.msra.mxu0 0.0
  %1634 = vmatprep.subr.mxu0 0.0
  %1635 = vmatpush1.msra.mxu0 0.0
  %1636 = vmatprep.subr.mxu0 0.0
  %1637 = vmatpush1.msra.mxu0 0.0
  %1638 = vmatprep.subr.mxu0 0.0
  %1639 = vmatpush1.msra.mxu0 0.0
  %1640 = vmatprep.subr.mxu0 0.0
  %1641 = vmatpush1.msra.mxu0 0.0
  %1642 = vmatprep.subr.mxu0 0.0
  %1643 = vmatpush1.msra.mxu0 0.0
  %1644 = vmatprep.subr.mxu0 0.0
  %1645 = vmatpush1.msra.mxu0 0.0
  %1646 = vmatprep.subr.mxu0 0.0
  %1647 = vmatpush1.msra.mxu0 0.0
  %1648 = vmatprep.subr.mxu0 0.0
  %1649 = vmatpush1.msra.mxu0 0.0
  %1650 = vmatprep.subr.mxu0 0.0
  %1651 = vmatpush1.msra.mxu0 0.0
  %1652 = vmatprep.subr.mxu0 0.0
  %1653 = vmatpush1.msra.mxu0 0.0
  %1654 = vmatprep.subr.mxu0 0.0
  %1655 = vmatpush1.msra.mxu0 0.0
  %1656 = vmatprep.subr.mxu0 0.0
  %1657 = vmatpush1.msra.mxu0 0.0
  %1658 = vmatprep.subr.mxu0 0.0
  %1659 = vmatpush1.msra.mxu0 0.0
  %1660 = vmatprep.mubr.f32.mxu0 0.0
  %1661 = vmatmul.mubr.f32.gmra.mrb[0].mxu0 %v1594
  %v1662 = vpop.f32.mrb[0].mxu0
  %v1663 = vadd.f32 0.0, %v1662
  %v1664 = vpop.f32.mrb[0].mxu0
  %1665 = vdwg.mxu0
  %v1666 = vadd.f32 %v1593, %v1663
  %v1667 = vxor.u32 %v1666, 2147483648
  %v1668 = vmul.f32 %v1667, 1.442695
  %v1669 = vpow.pop %v1668
  %v1670 = vadd.f32 %v1669, 1.0
  %v1671 = vrcp.pop %v1670
  %v1672 = vmul.f32 1.0, %v1671
  %v1673 = vtanh.pop %v1666
  %v1674 = vmul.f32 %v1672, %v1580
  %1676 = vrot.lane.b32.xlu0 %v1673, 64
  %v1677 = vpop.permute.xlu0 %1676
  %v1679 = vmul.f32 %v1672, %v1677
  %1681 = vrot.lane.b32.xlu0 %v1679, 32
  %v1682 = vpop.permute.xlu0 %1681
  %v1684 = vadd.f32 %v1674, %v1682
  %v1685 = vtanh.pop %v1684
  %1687 = vrot.lane.b32.xlu0 %v1685, 64
  %v1688 = vpop.permute.xlu0 %1687
  %v1690 = vmul.f32 %v1672, %v1688
  %1692 = vrot.lane.b32.xlu0 %v1690, 32
  %v1693 = vpop.permute.xlu0 %1692
  %1695 = vst.msk [vmem:[#allocation3 + $0x5] sm:$0x1] %vm236, %v1693
  %1696 = vst.msk [vmem:[#allocation3 + $0xc] sm:$0x2] %vm238, %v1693
  %v1697 = vld [vmem:[%s765] ss:$8 sm:$0x3]
  %v1698 = vsel %vm45, %v1693, 0
  %1700 = vmatprep.subr.mxu0 0.0
  %1701 = vmatpush1.msra.mxu0 %v1071
  %1702 = vmatprep.subr.mxu0 0.0
  %1703 = vmatpush1.msra.mxu0 %v1072
  %1704 = vmatprep.subr.mxu0 0.0
  %1705 = vmatpush1.msra.mxu0 %v1073
  %1706 = vmatprep.subr.mxu0 0.0
  %1707 = vmatpush1.msra.mxu0 %v1074
  %1708 = vmatprep.subr.mxu0 0.0
  %1709 = vmatpush1.msra.mxu0 0.0
  %1710 = vmatprep.subr.mxu0 0.0
  %1711 = vmatpush1.msra.mxu0 0.0
  %1712 = vmatprep.subr.mxu0 0.0
  %1713 = vmatpush1.msra.mxu0 0.0
  %1714 = vmatprep.subr.mxu0 0.0
  %1715 = vmatpush1.msra.mxu0 0.0
  %1716 = vmatprep.subr.mxu0 0.0
  %1717 = vmatpush1.msra.mxu0 0.0
  %1718 = vmatprep.subr.mxu0 0.0
  %1719 = vmatpush1.msra.mxu0 0.0
  %1720 = vmatprep.subr.mxu0 0.0
  %1721 = vmatpush1.msra.mxu0 0.0
  %1722 = vmatprep.subr.mxu0 0.0
  %1723 = vmatpush1.msra.mxu0 0.0
  %1724 = vmatprep.subr.mxu0 0.0
  %1725 = vmatpush1.msra.mxu0 0.0
  %1726 = vmatprep.subr.mxu0 0.0
  %1727 = vmatpush1.msra.mxu0 0.0
  %1728 = vmatprep.subr.mxu0 0.0
  %1729 = vmatpush1.msra.mxu0 0.0
  %1730 = vmatprep.subr.mxu0 0.0
  %1731 = vmatpush1.msra.mxu0 0.0
  %1732 = vmatprep.subr.mxu0 0.0
  %1733 = vmatpush1.msra.mxu0 0.0
  %1734 = vmatprep.subr.mxu0 0.0
  %1735 = vmatpush1.msra.mxu0 0.0
  %1736 = vmatprep.subr.mxu0 0.0
  %1737 = vmatpush1.msra.mxu0 0.0
  %1738 = vmatprep.subr.mxu0 0.0
  %1739 = vmatpush1.msra.mxu0 0.0
  %1740 = vmatprep.subr.mxu0 0.0
  %1741 = vmatpush1.msra.mxu0 0.0
  %1742 = vmatprep.subr.mxu0 0.0
  %1743 = vmatpush1.msra.mxu0 0.0
  %1744 = vmatprep.subr.mxu0 0.0
  %1745 = vmatpush1.msra.mxu0 0.0
  %1746 = vmatprep.subr.mxu0 0.0
  %1747 = vmatpush1.msra.mxu0 0.0
  %1748 = vmatprep.subr.mxu0 0.0
  %1749 = vmatpush1.msra.mxu0 0.0
  %1750 = vmatprep.subr.mxu0 0.0
  %1751 = vmatpush1.msra.mxu0 0.0
  %1752 = vmatprep.subr.mxu0 0.0
  %1753 = vmatpush1.msra.mxu0 0.0
  %1754 = vmatprep.subr.mxu0 0.0
  %1755 = vmatpush1.msra.mxu0 0.0
  %1756 = vmatprep.subr.mxu0 0.0
  %1757 = vmatpush1.msra.mxu0 0.0
  %1758 = vmatprep.subr.mxu0 0.0
  %1759 = vmatpush1.msra.mxu0 0.0
  %1760 = vmatprep.subr.mxu0 0.0
  %1761 = vmatpush1.msra.mxu0 0.0
  %1762 = vmatprep.subr.mxu0 0.0
  %1763 = vmatpush1.msra.mxu0 0.0
  %1764 = vmatprep.mubr.f32.mxu0 0.0
  %1765 = vmatmul.mubr.f32.gmra.mrb[0].mxu0 %v1698
  %v1766 = vpop.f32.mrb[0].mxu0
  %v1767 = vadd.f32 0.0, %v1766
  %v1768 = vpop.f32.mrb[0].mxu0
  %1769 = vdwg.mxu0
  %v1770 = vadd.f32 %v1697, %v1767
  %v1771 = vxor.u32 %v1770, 2147483648
  %v1772 = vmul.f32 %v1771, 1.442695
  %v1773 = vpow.pop %v1772
  %v1774 = vadd.f32 %v1773, 1.0
  %v1775 = vrcp.pop %v1774
  %v1776 = vmul.f32 1.0, %v1775
  %v1777 = vtanh.pop %v1770
  %v1778 = vmul.f32 %v1776, %v1684
  %1780 = vrot.lane.b32.xlu0 %v1777, 64
  %v1781 = vpop.permute.xlu0 %1780
  %v1783 = vmul.f32 %v1776, %v1781
  %1785 = vrot.lane.b32.xlu0 %v1783, 32
  %v1786 = vpop.permute.xlu0 %1785
  %v1788 = vadd.f32 %v1778, %v1786
  %v1789 = vtanh.pop %v1788
  %1791 = vrot.lane.b32.xlu0 %v1789, 64
  %v1792 = vpop.permute.xlu0 %1791
  %v1794 = vmul.f32 %v1776, %v1792
  %1796 = vrot.lane.b32.xlu0 %v1794, 32
  %v1797 = vpop.permute.xlu0 %1796
  %1799 = vst.msk [vmem:[#allocation3 + $0x6] sm:$0x1] %vm236, %v1797
  %1800 = vst.msk [vmem:[#allocation3 + $0xd] sm:$0x2] %vm238, %v1797
  %v1801 = vld [vmem:[%s870] ss:$8 sm:$0x3]
  %v1802 = vsel %vm45, %v1797, 0
  %1804 = vmatprep.subr.mxu0 0.0
  %1805 = vmatpush1.msra.mxu0 %v1071
  %1806 = vmatprep.subr.mxu0 0.0
  %1807 = vmatpush1.msra.mxu0 %v1072
  %1808 = vmatprep.subr.mxu0 0.0
  %1809 = vmatpush1.msra.mxu0 %v1073
  %1810 = vmatprep.subr.mxu0 0.0
  %1811 = vmatpush1.msra.mxu0 %v1074
  %1812 = vmatprep.subr.mxu0 0.0
  %1813 = vmatpush1.msra.mxu0 0.0
  %1814 = vmatprep.subr.mxu0 0.0
  %1815 = vmatpush1.msra.mxu0 0.0
  %1816 = vmatprep.subr.mxu0 0.0
  %1817 = vmatpush1.msra.mxu0 0.0
  %1818 = vmatprep.subr.mxu0 0.0
  %1819 = vmatpush1.msra.mxu0 0.0
  %1820 = vmatprep.subr.mxu0 0.0
  %1821 = vmatpush1.msra.mxu0 0.0
  %1822 = vmatprep.subr.mxu0 0.0
  %1823 = vmatpush1.msra.mxu0 0.0
  %1824 = vmatprep.subr.mxu0 0.0
  %1825 = vmatpush1.msra.mxu0 0.0
  %1826 = vmatprep.subr.mxu0 0.0
  %1827 = vmatpush1.msra.mxu0 0.0
  %1828 = vmatprep.subr.mxu0 0.0
  %1829 = vmatpush1.msra.mxu0 0.0
  %1830 = vmatprep.subr.mxu0 0.0
  %1831 = vmatpush1.msra.mxu0 0.0
  %1832 = vmatprep.subr.mxu0 0.0
  %1833 = vmatpush1.msra.mxu0 0.0
  %1834 = vmatprep.subr.mxu0 0.0
  %1835 = vmatpush1.msra.mxu0 0.0
  %1836 = vmatprep.subr.mxu0 0.0
  %1837 = vmatpush1.msra.mxu0 0.0
  %1838 = vmatprep.subr.mxu0 0.0
  %1839 = vmatpush1.msra.mxu0 0.0
  %1840 = vmatprep.subr.mxu0 0.0
  %1841 = vmatpush1.msra.mxu0 0.0
  %1842 = vmatprep.subr.mxu0 0.0
  %1843 = vmatpush1.msra.mxu0 0.0
  %1844 = vmatprep.subr.mxu0 0.0
  %1845 = vmatpush1.msra.mxu0 0.0
  %1846 = vmatprep.subr.mxu0 0.0
  %1847 = vmatpush1.msra.mxu0 0.0
  %1848 = vmatprep.subr.mxu0 0.0
  %1849 = vmatpush1.msra.mxu0 0.0
  %1850 = vmatprep.subr.mxu0 0.0
  %1851 = vmatpush1.msra.mxu0 0.0
  %1852 = vmatprep.subr.mxu0 0.0
  %1853 = vmatpush1.msra.mxu0 0.0
  %1854 = vmatprep.subr.mxu0 0.0
  %1855 = vmatpush1.msra.mxu0 0.0
  %1856 = vmatprep.subr.mxu0 0.0
  %1857 = vmatpush1.msra.mxu0 0.0
  %1858 = vmatprep.subr.mxu0 0.0
  %1859 = vmatpush1.msra.mxu0 0.0
  %1860 = vmatprep.subr.mxu0 0.0
  %1861 = vmatpush1.msra.mxu0 0.0
  %1862 = vmatprep.subr.mxu0 0.0
  %1863 = vmatpush1.msra.mxu0 0.0
  %1864 = vmatprep.subr.mxu0 0.0
  %1865 = vmatpush1.msra.mxu0 0.0
  %1866 = vmatprep.subr.mxu0 0.0
  %1867 = vmatpush1.msra.mxu0 0.0
  %1868 = vmatprep.mubr.f32.mxu0 0.0
  %1869 = vmatmul.mubr.f32.gmra.mrb[0].mxu0 %v1802
  %v1870 = vpop.f32.mrb[0].mxu0
  %v1871 = vadd.f32 0.0, %v1870
  %v1872 = vpop.f32.mrb[0].mxu0
  %1873 = vdwg.mxu0
  %v1874 = vadd.f32 %v1801, %v1871
  %v1875 = vxor.u32 %v1874, 2147483648
  %v1876 = vmul.f32 %v1875, 1.442695
  %v1877 = vpow.pop %v1876
  %v1878 = vadd.f32 %v1877, 1.0
  %v1879 = vrcp.pop %v1878
  %v1880 = vmul.f32 1.0, %v1879
  %v1881 = vtanh.pop %v1874
  %v1882 = vmul.f32 %v1880, %v1788
  %1884 = vrot.lane.b32.xlu0 %v1881, 64
  %v1885 = vpop.permute.xlu0 %1884
  %v1887 = vmul.f32 %v1880, %v1885
  %1889 = vrot.lane.b32.xlu0 %v1887, 32
  %v1890 = vpop.permute.xlu0 %1889
  %v1892 = vadd.f32 %v1882, %v1890
  %v1893 = vtanh.pop %v1892
  %1895 = vrot.lane.b32.xlu0 %v1893, 64
  %v1896 = vpop.permute.xlu0 %1895
  %v1898 = vmul.f32 %v1880, %v1896
  %1900 = vrot.lane.b32.xlu0 %v1898, 32
  %v1901 = vpop.permute.xlu0 %1900
  %1903 = vst.msk [vmem:[#allocation3 + $0x7] sm:$0x1] %vm236, %v1901
  %1904 = vst.msk [vmem:[#allocation3 + $0xe] sm:$0x2] %vm238, %v1901
  %v1905 = vld [vmem:[#allocation3] sm:$0xff]
  %v1906 = vld [vmem:[#allocation3 + $0x8] sm:$0xff]
  %v1907 = vld [vmem:[%s7] sm:$0xff]
  %v1908 = vld [vmem:[%s7 + $0x8] sm:$0xff]
  %v1909 = vld [vmem:[%s7 + $0x10] sm:$0xff]
  %v1910 = vld [vmem:[%s7 + $0x18] sm:$0xff]
  %v1911 = vld [vmem:[%s8] sm:$0x1]
  %v1913 = vlaneseq
  %v1914 = vshrl.u32 %v1913, 7
  %v1915 = vsub.s32 0, %v1914
  %v1916 = vrot.slane %v1911, %v1915
  %v1919 = vsel %vm45, %v1905, 0
  %v1922 = vsel %vm45, %v1906, 0
  %1924 = vmatprep.subr.mxu0 0.0
  %1925 = vmatpush1.msra.mxu0 %v1907
  %1926 = vmatprep.subr.mxu0 0.0
  %1927 = vmatpush1.msra.mxu0 %v1908
  %1928 = vmatprep.subr.mxu0 0.0
  %1929 = vmatpush1.msra.mxu0 %v1909
  %1930 = vmatprep.subr.mxu0 0.0
  %1931 = vmatpush1.msra.mxu0 %v1910
  %1932 = vmatprep.subr.mxu0 0.0
  %1933 = vmatpush1.msra.mxu0 0.0
  %1934 = vmatprep.subr.mxu0 0.0
  %1935 = vmatpush1.msra.mxu0 0.0
  %1936 = vmatprep.subr.mxu0 0.0
  %1937 = vmatpush1.msra.mxu0 0.0
  %1938 = vmatprep.subr.mxu0 0.0
  %1939 = vmatpush1.msra.mxu0 0.0
  %1940 = vmatprep.subr.mxu0 0.0
  %1941 = vmatpush1.msra.mxu0 0.0
  %1942 = vmatprep.subr.mxu0 0.0
  %1943 = vmatpush1.msra.mxu0 0.0
  %1944 = vmatprep.subr.mxu0 0.0
  %1945 = vmatpush1.msra.mxu0 0.0
  %1946 = vmatprep.subr.mxu0 0.0
  %1947 = vmatpush1.msra.mxu0 0.0
  %1948 = vmatprep.subr.mxu0 0.0
  %1949 = vmatpush1.msra.mxu0 0.0
  %1950 = vmatprep.subr.mxu0 0.0
  %1951 = vmatpush1.msra.mxu0 0.0
  %1952 = vmatprep.subr.mxu0 0.0
  %1953 = vmatpush1.msra.mxu0 0.0
  %1954 = vmatprep.subr.mxu0 0.0
  %1955 = vmatpush1.msra.mxu0 0.0
  %1956 = vmatprep.subr.mxu0 0.0
  %1957 = vmatpush1.msra.mxu0 0.0
  %1958 = vmatprep.subr.mxu0 0.0
  %1959 = vmatpush1.msra.mxu0 0.0
  %1960 = vmatprep.subr.mxu0 0.0
  %1961 = vmatpush1.msra.mxu0 0.0
  %1962 = vmatprep.subr.mxu0 0.0
  %1963 = vmatpush1.msra.mxu0 0.0
  %1964 = vmatprep.subr.mxu0 0.0
  %1965 = vmatpush1.msra.mxu0 0.0
  %1966 = vmatprep.subr.mxu0 0.0
  %1967 = vmatpush1.msra.mxu0 0.0
  %1968 = vmatprep.subr.mxu0 0.0
  %1969 = vmatpush1.msra.mxu0 0.0
  %1970 = vmatprep.subr.mxu0 0.0
  %1971 = vmatpush1.msra.mxu0 0.0
  %1972 = vmatprep.subr.mxu0 0.0
  %1973 = vmatpush1.msra.mxu0 0.0
  %1974 = vmatprep.subr.mxu0 0.0
  %1975 = vmatpush1.msra.mxu0 0.0
  %1976 = vmatprep.subr.mxu0 0.0
  %1977 = vmatpush1.msra.mxu0 0.0
  %1978 = vmatprep.subr.mxu0 0.0
  %1979 = vmatpush1.msra.mxu0 0.0
  %1980 = vmatprep.subr.mxu0 0.0
  %1981 = vmatpush1.msra.mxu0 0.0
  %1982 = vmatprep.subr.mxu0 0.0
  %1983 = vmatpush1.msra.mxu0 0.0
  %1984 = vmatprep.subr.mxu0 0.0
  %1985 = vmatpush1.msra.mxu0 0.0
  %1986 = vmatprep.subr.mxu0 0.0
  %1987 = vmatpush1.msra.mxu0 0.0
  %1988 = vmatprep.mubr.f32.mxu0 0.0
  %1989 = vmatmul.mubr.f32.gmra.mrb[0].mxu0 %v1919
  %v1990 = vpop.f32.mrb[0].mxu0
  %v1991 = vadd.f32 %v1916, %v1990
  %v1992 = vpop.f32.mrb[0].mxu0
  %1993 = vmatprep.mubr.f32.mxu0 0.0
  %1994 = vmatmul.mubr.f32.gmra.mrb[0].mxu0 %v1922
  %v1995 = vpop.f32.mrb[0].mxu0
  %v1996 = vadd.f32 %v1916, %v1995
  %v1997 = vpop.f32.mrb[0].mxu0
  %1998 = vdwg.mxu0
  %1999 = vst [vmem:[%s9] sm:$0xff] %v1991
  %2000 = vst [vmem:[%s9 + $0x8] sm:$0xff] %v1996
  // Predicated region
  $region38: #{eou_vad_lstm_forward.1} parent=0 // pred_check
    _
  $region39: #{eou_vad_lstm_forward.1} parent=0 // pred_check_branch
    %2002 = sbr.rel (0) target = $region41
  $region40: #{eou_vad_lstm_forward.1} parent=0 // pred_region
    _
  $region41: #{eou_vad_lstm_forward.1} parent=0 // pred_fallthru
    _
  // Predicated region
  $region42: #{eou_vad_lstm_forward.1} parent=0 // pred_check
    _
  $region43: #{eou_vad_lstm_forward.1} parent=0 // pred_check_branch
    %2004 = sbr.rel (0) target = $region45
  $region44: #{eou_vad_lstm_forward.1} parent=0 // pred_region
    _
  $region45: #{eou_vad_lstm_forward.1} parent=0 // pred_fallthru
    _

</llo_original>
